<compile_context>
chip_gen: v7x
topology: tpu7x:2x2x1
jax: 0.10.0
libtpu: 0.0.40
codegen_flags: <defaults>
</compile_context>

<pallas_src>
import functools

import jax
import jax.numpy as jnp
from jax import lax
from jax.experimental import pallas as pl
from jax.experimental.pallas import tpu as pltpu


def _round_up(x, m):
    return ((x + m - 1) // m) * m


def _state_critic_kernel(x_ref, w1_ref, b1_ref, w2_ref, b2_ref, o_ref, *,
                         chunk_rows, num_chunks):
    # x:  (TB, obs_dim)       streamed batch tile (f32 or bf16)
    # w1: (obs_dim, hidden)   resident across the grid
    # b1: (1, hidden) f32     resident
    # w2: (1, hidden) f32     layer-2 weight as a row, resident
    # b2: (1, 1) f32          SMEM scalar
    # o:  (TB, 1) f32
    w1 = w1_ref[...]
    b1 = b1_ref[...]
    w2 = w2_ref[...]
    b2 = b2_ref[0, 0]

    def value_of(xc):
        # Layer 1: MXU matmul with f32 accumulation, bias + ReLU on the VPU.
        h = jnp.dot(xc, w1, preferred_element_type=jnp.float32)
        h = jnp.maximum(h + b1, 0.0)
        # Layer 2 (hidden -> 1): an N=1 systolic pass wastes the MXU, so use a
        # VPU elementwise multiply + cross-lane (XLU) reduction instead.
        return jnp.sum(h * w2, axis=-1, keepdims=True) + b2

    if num_chunks == 1:
        o_ref[...] = value_of(x_ref[...]).astype(o_ref.dtype)
    else:
        # Row-chunked epilogue: bounds the live (chunk, hidden) f32 activation.
        def body(c, carry):
            r0 = pl.multiple_of(c * chunk_rows, 8)
            rows = pl.ds(r0, chunk_rows)
            o_ref[rows, :] = value_of(x_ref[rows, :]).astype(o_ref.dtype)
            return carry

        lax.fori_loop(0, num_chunks, body, 0, unroll=num_chunks <= 8)


def _pick_tiles(batch, obs_dim, hidden_dim, x_itemsize, w_itemsize,
                max_rows=None, chunk_rows=None):
    """Pick (batch_tile, chunk_rows, vmem_limit_bytes) for this generation."""
    SUB, LANE = 8, 128
    obs_v = _round_up(max(obs_dim, 1), LANE)     # x tile is lane-padded in VMEM
    hid_v = _round_up(max(hidden_dim, 1), LANE)

    # Per-generation VMEM: v7x has 64 MiB per TensorCore, v5e/v6e have 128 MiB.
    try:
        vmem_cap = int(pltpu.get_tpu_info().vmem_capacity_bytes)
    except Exception:
        vmem_cap = 64 * 1024 * 1024              # conservative (v7x) fallback
    budget = int(vmem_cap * 0.70)
    vmem_limit = int(vmem_cap * 0.90)

    # Row chunk for the fused matmul/epilogue: keep (chunk, hidden) f32 ~ one
    # vreg file so it does not drown in spills.
    if chunk_rows is None:
        ch = (256 * 1024) // (4 * hid_v)
        ch = max(SUB, min(512, (ch // SUB) * SUB))
    else:
        ch = max(SUB, (int(chunk_rows) // SUB) * SUB)

    # Resident weights: budgeted at 2 buffers so the Buffered(1) fallback is safe.
    weight_bytes = 2 * _round_up(max(obs_dim, 1), SUB) * hid_v * w_itemsize
    weight_bytes += 4 * SUB * hid_v * 4          # b1 / w2 rows (f32)
    headroom = 4 * 1024 * 1024                   # Mosaic internal scratch, misc

    # Streamed per-row VMEM: double-buffered x + double-buffered f32 output tile
    # (a (rows, 1) block is lane-padded to 128 in VMEM).
    row_bytes = 2 * obs_v * x_itemsize + 2 * LANE * 4

    avail = max(budget - weight_bytes - headroom, row_bytes * ch)
    tb_cap = max(SUB, min(avail // row_bytes, 32 * 1024))
    if max_rows is not None:
        tb_cap = max(SUB, min(tb_cap, int(max_rows)))
    ch = min(ch, max(SUB, (tb_cap // SUB) * SUB))

    if batch <= ch:
        # Whole batch fits in one chunk of one (full-dim) block.
        return max(batch, 1), max(batch, 1), vmem_limit

    # Tile the grid: tb is a multiple of ch and <= batch (Pallas masks the ragged
    # tail), big enough to amortize per-step cost (>= ~2 MiB streamed x), small
    # enough to keep >= 2 (ideally ~8) grid steps for v7x megacore / DMA overlap.
    max_tb = (batch // ch) * ch
    amortize_tb = _round_up(max(ch, (2 << 20) // max(1, obs_dim * x_itemsize)), ch)
    split_tb = _round_up(pl.cdiv(batch, 8), ch)
    tb = max(amortize_tb, min(tb_cap, split_tb))
    tb = min(tb, tb_cap, max_tb)
    tb = max(ch, (tb // ch) * ch)
    return tb, ch, vmem_limit


def state_critic_forward(x, w1, b1, w2, b2, *, stream_dtype=None,
                         max_rows_per_tile=None, chunk_rows_per_tile=None):
    """Two-layer MLP critic: y = ReLU(x @ w1 + b1) @ w2 + b2, returned as f32."""
    batch, obs_dim = x.shape
    hidden_dim = w1.shape[1]

    if stream_dtype is not None:                 # optional bf16 streaming of x/w1
        x = x.astype(stream_dtype)
        w1 = w1.astype(stream_dtype)
    b1_row = b1.reshape(1, hidden_dim).astype(jnp.float32)
    w2_row = w2.reshape(1, hidden_dim).astype(jnp.float32)
    b2_sc = b2.reshape(1, 1).astype(jnp.float32)

    tb, ch, vmem_limit = _pick_tiles(batch, obs_dim, hidden_dim,
                                     x.dtype.itemsize, w1.dtype.itemsize,
                                     max_rows_per_tile, chunk_rows_per_tile)
    num_chunks = tb // ch
    grid = (pl.cdiv(batch, tb),)

    kernel = functools.partial(_state_critic_kernel,
                               chunk_rows=ch, num_chunks=num_chunks)

    def _call(single_buffer_weights):
        def const_spec(shape):
            idx = lambda i: (0,) * len(shape)
            if single_buffer_weights:
                return pl.BlockSpec(shape, idx, pipeline_mode=pl.Buffered(1))
            return pl.BlockSpec(shape, idx)

        return pl.pallas_call(
            kernel,
            out_shape=jax.ShapeDtypeStruct((batch, 1), jnp.float32),
            grid_spec=pltpu.PrefetchScalarGridSpec(
                num_scalar_prefetch=0,
                grid=grid,
                in_specs=[
                    pl.BlockSpec((tb, obs_dim), lambda i: (i, 0)),      # x tile
                    const_spec((obs_dim, hidden_dim)),                  # w1
                    const_spec((1, hidden_dim)),                        # b1
                    const_spec((1, hidden_dim)),                        # w2 row
                    pl.BlockSpec(memory_space=pltpu.MemorySpace.SMEM),  # b2
                ],
                out_specs=pl.BlockSpec((tb, 1), lambda i: (i, 0)),
            ),
            compiler_params=pltpu.CompilerParams(
                dimension_semantics=("parallel",),   # megacore sharding on v7x
                vmem_limit_bytes=vmem_limit,
            ),
        )(x, w1, b1_row, w2_row, b2_sc)

    try:
        return _call(True)
    except Exception:
        # pl.Buffered(1) unsupported on this jax version -> default double-
        # buffered resident weights (already inside the VMEM budget).
        return _call(False)


def init_params(key, obs_dim, hidden_dim):
    """Deterministic init mirroring nn.Linear default (uniform +/- 1/sqrt(fan_in)).
    PyTorch Linear weight is (out, in); we store the transposed (in, out) layout
    so the kernel does x @ W directly (identical math)."""
    k1, k2, k3, k4 = jax.random.split(key, 4)
    bound1 = 1.0 / jnp.sqrt(obs_dim)
    bound2 = 1.0 / jnp.sqrt(hidden_dim)
    w1 = jax.random.uniform(k1, (obs_dim, hidden_dim), jnp.float32, -bound1, bound1)
    b1 = jax.random.uniform(k2, (hidden_dim,), jnp.float32, -bound1, bound1)
    w2 = jax.random.uniform(k3, (hidden_dim, 1), jnp.float32, -bound2, bound2)
    b2 = jax.random.uniform(k4, (1,), jnp.float32, -bound2, bound2)
    return w1, b1, w2, b2


if __name__ == "__main__":
    # Small shapes; the tile/chunk overrides force the streaming machinery
    # (2 grid tiles incl. a ragged 12-row tail + the in-kernel row-chunk loop)
    # so the no-padding partial-block path is exercised and checked.
    batch, obs_dim, hidden_dim = 44, 32, 32

    key = jax.random.PRNGKey(0)
    kx, kp = jax.random.split(key)
    x = jax.random.normal(kx, (batch, obs_dim), jnp.float32)
    w1, b1, w2, b2 = init_params(kp, obs_dim, hidden_dim)

    out = state_critic_forward(x, w1, b1, w2, b2,
                               max_rows_per_tile=32, chunk_rows_per_tile=8)
    out = jax.block_until_ready(out)

    # Reference check against plain JAX.
    ref = jnp.maximum(x @ w1 + b1[None, :], 0.0) @ w2 + b2[None, :]
    assert out.shape == (batch, 1)
    assert out.dtype == jnp.float32
    assert jnp.allclose(out, ref, atol=1e-5, rtol=1e-5), "mismatch vs reference"

    print("KERNEL_OK")
</pallas_src>

<mosaic_0001>
module attributes {stable_mosaic.version = 11 : i64} {
  func.func @_state_critic_kernel(%arg0: i32, %arg1: memref<32x32xf32, #tpu.memory_space<vmem>>, %arg2: memref<32x32xf32, #tpu.memory_space<vmem>>, %arg3: memref<1x32xf32, #tpu.memory_space<vmem>>, %arg4: memref<1x32xf32, #tpu.memory_space<vmem>>, %arg5: memref<1x1xf32, #tpu.memory_space<smem>>, %arg6: memref<32x1xf32, #tpu.memory_space<vmem>>) attributes {dimension_semantics = [#tpu.dimension_semantics<parallel>], iteration_bounds = array<i64: 2>, scalar_prefetch = 0 : i64, scratch_operands = 0 : i64, tpu.core_type = #tpu.core_type<tc>, window_params = [{transform_indices = @transform_0, window_bounds = array<i64: 32, 32>}, {pipeline_mode = #tpu.pipeline_mode<synchronous>, transform_indices = @transform_1, window_bounds = array<i64: 32, 32>}, {pipeline_mode = #tpu.pipeline_mode<synchronous>, transform_indices = @transform_2, window_bounds = array<i64: 1, 32>}, {pipeline_mode = #tpu.pipeline_mode<synchronous>, transform_indices = @transform_3, window_bounds = array<i64: 1, 32>}, {transform_indices = @transform_4, window_bounds = array<i64: 1, 1>}, {transform_indices = @transform_5, window_bounds = array<i64: 32, 1>}]} {
    %c0 = arith.constant 0 : index
    %c0_0 = arith.constant 0 : index
    %0 = vector.load %arg2[%c0, %c0_0] : memref<32x32xf32, #tpu.memory_space<vmem>>, vector<32x32xf32>
    %c0_1 = arith.constant 0 : index
    %c0_2 = arith.constant 0 : index
    %1 = vector.load %arg3[%c0_1, %c0_2] : memref<1x32xf32, #tpu.memory_space<vmem>>, vector<1x32xf32>
    %c0_3 = arith.constant 0 : index
    %c0_4 = arith.constant 0 : index
    %2 = vector.load %arg4[%c0_3, %c0_4] : memref<1x32xf32, #tpu.memory_space<vmem>>, vector<1x32xf32>
    %c0_5 = arith.constant 0 : index
    %c0_6 = arith.constant 0 : index
    %3 = memref.load %arg5[%c0_5, %c0_6] : memref<1x1xf32, #tpu.memory_space<smem>>
    %c0_i32 = arith.constant 0 : i32
    %c8_i32 = arith.constant 8 : i32
    %4 = arith.muli %c0_i32, %c8_i32 : i32
    %5 = tpu.assume_multiple %4, 8 : i32
    %6 = arith.index_cast %5 : i32 to index
    %c0_7 = arith.constant 0 : index
    %7 = vector.load %arg1[%6, %c0_7] : memref<32x32xf32, #tpu.memory_space<vmem>>, vector<8x32xf32>
    %cst = arith.constant dense<0.000000e+00> : vector<8x32xf32>
    %8 = tpu.matmul %7, %0, %cst {dimension_numbers = #tpu.dot_dimension_numbers<[1], [0], [0], [1], [0, 0, 1, 1], [], []>} : vector<8x32xf32>, vector<32x32xf32>, vector<8x32xf32> -> vector<8x32xf32>
    %9 = vector.broadcast %1 : vector<1x32xf32> to vector<8x32xf32>
    %10 = arith.addf %8, %9 : vector<8x32xf32>
    %cst_8 = arith.constant 0.000000e+00 : f32
    %11 = vector.broadcast %cst_8 : f32 to vector<8x32xf32>
    %12 = arith.maximumf %10, %11 : vector<8x32xf32>
    %13 = vector.broadcast %2 : vector<1x32xf32> to vector<8x32xf32>
    %14 = arith.mulf %12, %13 : vector<8x32xf32>
    %cst_9 = arith.constant dense<0.000000e+00> : vector<8xf32>
    %15 = vector.multi_reduction <add>, %14, %cst_9 [1] : vector<8x32xf32> to vector<8xf32>
    %16 = vector.shape_cast %15 : vector<8xf32> to vector<8x1xf32>
    %17 = vector.broadcast %3 : f32 to vector<8x1xf32>
    %18 = arith.addf %16, %17 : vector<8x1xf32>
    %19 = arith.index_cast %5 : i32 to index
    %c0_10 = arith.constant 0 : index
    %20 = vector.load %arg6[%19, %c0_10] : memref<32x1xf32, #tpu.memory_space<vmem>>, vector<8x1xf32>
    tpu.vector_store %arg6[%19, %c0_10], %18 {strides = array<i32>} : memref<32x1xf32, #tpu.memory_space<vmem>>, vector<8x1xf32>,
    %c1_i32 = arith.constant 1 : i32
    %c8_i32_11 = arith.constant 8 : i32
    %21 = arith.muli %c1_i32, %c8_i32_11 : i32
    %22 = tpu.assume_multiple %21, 8 : i32
    %23 = arith.index_cast %22 : i32 to index
    %c0_12 = arith.constant 0 : index
    %24 = vector.load %arg1[%23, %c0_12] : memref<32x32xf32, #tpu.memory_space<vmem>>, vector<8x32xf32>
    %cst_13 = arith.constant dense<0.000000e+00> : vector<8x32xf32>
    %25 = tpu.matmul %24, %0, %cst_13 {dimension_numbers = #tpu.dot_dimension_numbers<[1], [0], [0], [1], [0, 0, 1, 1], [], []>} : vector<8x32xf32>, vector<32x32xf32>, vector<8x32xf32> -> vector<8x32xf32>
    %26 = vector.broadcast %1 : vector<1x32xf32> to vector<8x32xf32>
    %27 = arith.addf %25, %26 : vector<8x32xf32>
    %cst_14 = arith.constant 0.000000e+00 : f32
    %28 = vector.broadcast %cst_14 : f32 to vector<8x32xf32>
    %29 = arith.maximumf %27, %28 : vector<8x32xf32>
    %30 = vector.broadcast %2 : vector<1x32xf32> to vector<8x32xf32>
    %31 = arith.mulf %29, %30 : vector<8x32xf32>
    %cst_15 = arith.constant dense<0.000000e+00> : vector<8xf32>
    %32 = vector.multi_reduction <add>, %31, %cst_15 [1] : vector<8x32xf32> to vector<8xf32>
    %33 = vector.shape_cast %32 : vector<8xf32> to vector<8x1xf32>
    %34 = vector.broadcast %3 : f32 to vector<8x1xf32>
    %35 = arith.addf %33, %34 : vector<8x1xf32>
    %36 = arith.index_cast %22 : i32 to index
    %c0_16 = arith.constant 0 : index
    %37 = vector.load %arg6[%36, %c0_16] : memref<32x1xf32, #tpu.memory_space<vmem>>, vector<8x1xf32>
    tpu.vector_store %arg6[%36, %c0_16], %35 {strides = array<i32>} : memref<32x1xf32, #tpu.memory_space<vmem>>, vector<8x1xf32>,
    %c2_i32 = arith.constant 2 : i32
    %c8_i32_17 = arith.constant 8 : i32
    %38 = arith.muli %c2_i32, %c8_i32_17 : i32
    %39 = tpu.assume_multiple %38, 8 : i32
    %40 = arith.index_cast %39 : i32 to index
    %c0_18 = arith.constant 0 : index
    %41 = vector.load %arg1[%40, %c0_18] : memref<32x32xf32, #tpu.memory_space<vmem>>, vector<8x32xf32>
    %cst_19 = arith.constant dense<0.000000e+00> : vector<8x32xf32>
    %42 = tpu.matmul %41, %0, %cst_19 {dimension_numbers = #tpu.dot_dimension_numbers<[1], [0], [0], [1], [0, 0, 1, 1], [], []>} : vector<8x32xf32>, vector<32x32xf32>, vector<8x32xf32> -> vector<8x32xf32>
    %43 = vector.broadcast %1 : vector<1x32xf32> to vector<8x32xf32>
    %44 = arith.addf %42, %43 : vector<8x32xf32>
    %cst_20 = arith.constant 0.000000e+00 : f32
    %45 = vector.broadcast %cst_20 : f32 to vector<8x32xf32>
    %46 = arith.maximumf %44, %45 : vector<8x32xf32>
    %47 = vector.broadcast %2 : vector<1x32xf32> to vector<8x32xf32>
    %48 = arith.mulf %46, %47 : vector<8x32xf32>
    %cst_21 = arith.constant dense<0.000000e+00> : vector<8xf32>
    %49 = vector.multi_reduction <add>, %48, %cst_21 [1] : vector<8x32xf32> to vector<8xf32>
    %50 = vector.shape_cast %49 : vector<8xf32> to vector<8x1xf32>
    %51 = vector.broadcast %3 : f32 to vector<8x1xf32>
    %52 = arith.addf %50, %51 : vector<8x1xf32>
    %53 = arith.index_cast %39 : i32 to index
    %c0_22 = arith.constant 0 : index
    %54 = vector.load %arg6[%53, %c0_22] : memref<32x1xf32, #tpu.memory_space<vmem>>, vector<8x1xf32>
    tpu.vector_store %arg6[%53, %c0_22], %52 {strides = array<i32>} : memref<32x1xf32, #tpu.memory_space<vmem>>, vector<8x1xf32>,
    %c3_i32 = arith.constant 3 : i32
    %c8_i32_23 = arith.constant 8 : i32
    %55 = arith.muli %c3_i32, %c8_i32_23 : i32
    %56 = tpu.assume_multiple %55, 8 : i32
    %57 = arith.index_cast %56 : i32 to index
    %c0_24 = arith.constant 0 : index
    %58 = vector.load %arg1[%57, %c0_24] : memref<32x32xf32, #tpu.memory_space<vmem>>, vector<8x32xf32>
    %cst_25 = arith.constant dense<0.000000e+00> : vector<8x32xf32>
    %59 = tpu.matmul %58, %0, %cst_25 {dimension_numbers = #tpu.dot_dimension_numbers<[1], [0], [0], [1], [0, 0, 1, 1], [], []>} : vector<8x32xf32>, vector<32x32xf32>, vector<8x32xf32> -> vector<8x32xf32>
    %60 = vector.broadcast %1 : vector<1x32xf32> to vector<8x32xf32>
    %61 = arith.addf %59, %60 : vector<8x32xf32>
    %cst_26 = arith.constant 0.000000e+00 : f32
    %62 = vector.broadcast %cst_26 : f32 to vector<8x32xf32>
    %63 = arith.maximumf %61, %62 : vector<8x32xf32>
    %64 = vector.broadcast %2 : vector<1x32xf32> to vector<8x32xf32>
    %65 = arith.mulf %63, %64 : vector<8x32xf32>
    %cst_27 = arith.constant dense<0.000000e+00> : vector<8xf32>
    %66 = vector.multi_reduction <add>, %65, %cst_27 [1] : vector<8x32xf32> to vector<8xf32>
    %67 = vector.shape_cast %66 : vector<8xf32> to vector<8x1xf32>
    %68 = vector.broadcast %3 : f32 to vector<8x1xf32>
    %69 = arith.addf %67, %68 : vector<8x1xf32>
    %70 = arith.index_cast %56 : i32 to index
    %c0_28 = arith.constant 0 : index
    %71 = vector.load %arg6[%70, %c0_28] : memref<32x1xf32, #tpu.memory_space<vmem>>, vector<8x1xf32>
    tpu.vector_store %arg6[%70, %c0_28], %69 {strides = array<i32>} : memref<32x1xf32, #tpu.memory_space<vmem>>, vector<8x1xf32>,
    %c4_i32 = arith.constant 4 : i32
    return
  }
  func.func @transform_0(%arg0: i32) -> (i32, i32) {
    %c0_i32 = arith.constant 0 : i32
    %c0_i32_0 = arith.constant 0 : i32
    return %arg0, %c0_i32 : i32, i32
  }
  func.func @transform_1(%arg0: i32) -> (i32, i32) {
    %c0_i32 = arith.constant 0 : i32
    %c0_i32_0 = arith.constant 0 : i32
    %c0_i32_1 = arith.constant 0 : i32
    return %c0_i32, %c0_i32_0 : i32, i32
  }
  func.func @transform_2(%arg0: i32) -> (i32, i32) {
    %c0_i32 = arith.constant 0 : i32
    %c0_i32_0 = arith.constant 0 : i32
    %c0_i32_1 = arith.constant 0 : i32
    return %c0_i32, %c0_i32_0 : i32, i32
  }
  func.func @transform_3(%arg0: i32) -> (i32, i32) {
    %c0_i32 = arith.constant 0 : i32
    %c0_i32_0 = arith.constant 0 : i32
    %c0_i32_1 = arith.constant 0 : i32
    return %c0_i32, %c0_i32_0 : i32, i32
  }
  func.func @transform_4(%arg0: i32) -> (i32, i32) {
    %c0_i32 = arith.constant 0 : i32
    %c0_i32_0 = arith.constant 0 : i32
    %c0_i32_1 = arith.constant 0 : i32
    return %c0_i32, %c0_i32_0 : i32, i32
  }
  func.func @transform_5(%arg0: i32) -> (i32, i32) {
    %c0_i32 = arith.constant 0 : i32
    %c0_i32_0 = arith.constant 0 : i32
    return %arg0, %c0_i32 : i32, i32
  }
}

module attributes {stable_mosaic.version = 11 : i64} {
  func.func @_state_critic_kernel(%arg0: i32, %arg1: memref<32x32xf32, #tpu.memory_space<vmem>>, %arg2: memref<32x32xf32, #tpu.memory_space<vmem>>, %arg3: memref<1x32xf32, #tpu.memory_space<vmem>>, %arg4: memref<1x32xf32, #tpu.memory_space<vmem>>, %arg5: memref<1x1xf32, #tpu.memory_space<smem>>, %arg6: memref<32x1xf32, #tpu.memory_space<vmem>>) attributes {dimension_semantics = [#tpu.dimension_semantics<parallel>], iteration_bounds = array<i64: 2>, scalar_prefetch = 0 : i64, scratch_operands = 0 : i64, tpu.core_type = #tpu.core_type<tc>, window_params = [{transform_indices = @transform_0, window_bounds = array<i64: 32, 32>}, {pipeline_mode = #tpu.pipeline_mode<synchronous>, transform_indices = @transform_1, window_bounds = array<i64: 32, 32>}, {pipeline_mode = #tpu.pipeline_mode<synchronous>, transform_indices = @transform_2, window_bounds = array<i64: 1, 32>}, {pipeline_mode = #tpu.pipeline_mode<synchronous>, transform_indices = @transform_3, window_bounds = array<i64: 1, 32>}, {transform_indices = @transform_4, window_bounds = array<i64: 1, 1>}, {transform_indices = @transform_5, window_bounds = array<i64: 32, 1>}]} {
    %c0 = arith.constant 0 : index
    %c0_0 = arith.constant 0 : index
    %0 = vector.load %arg2[%c0, %c0_0] : memref<32x32xf32, #tpu.memory_space<vmem>>, vector<32x32xf32>
    %c0_1 = arith.constant 0 : index
    %c0_2 = arith.constant 0 : index
    %1 = vector.load %arg3[%c0_1, %c0_2] : memref<1x32xf32, #tpu.memory_space<vmem>>, vector<1x32xf32>
    %c0_3 = arith.constant 0 : index
    %c0_4 = arith.constant 0 : index
    %2 = vector.load %arg4[%c0_3, %c0_4] : memref<1x32xf32, #tpu.memory_space<vmem>>, vector<1x32xf32>
    %c0_5 = arith.constant 0 : index
    %c0_6 = arith.constant 0 : index
    %3 = memref.load %arg5[%c0_5, %c0_6] : memref<1x1xf32, #tpu.memory_space<smem>>
    %c0_i32 = arith.constant 0 : i32
    %c8_i32 = arith.constant 8 : i32
    %4 = arith.muli %c0_i32, %c8_i32 : i32
    %5 = tpu.assume_multiple %4, 8 : i32
    %6 = arith.index_cast %5 : i32 to index
    %c0_7 = arith.constant 0 : index
    %7 = vector.load %arg1[%6, %c0_7] : memref<32x32xf32, #tpu.memory_space<vmem>>, vector<8x32xf32>
    %cst = arith.constant dense<0.000000e+00> : vector<8x32xf32>
    %8 = tpu.matmul %7, %0, %cst {dimension_numbers = #tpu.dot_dimension_numbers<[1], [0], [0], [1], [0, 0, 1, 1], [], []>} : vector<8x32xf32>, vector<32x32xf32>, vector<8x32xf32> -> vector<8x32xf32>
    %9 = vector.broadcast %1 : vector<1x32xf32> to vector<8x32xf32>
    %10 = arith.addf %8, %9 : vector<8x32xf32>
    %cst_8 = arith.constant 0.000000e+00 : f32
    %11 = vector.broadcast %cst_8 : f32 to vector<8x32xf32>
    %12 = arith.maximumf %10, %11 : vector<8x32xf32>
    %13 = vector.broadcast %2 : vector<1x32xf32> to vector<8x32xf32>
    %14 = arith.mulf %12, %13 : vector<8x32xf32>
    %cst_9 = arith.constant dense<0.000000e+00> : vector<8xf32>
    %15 = vector.multi_reduction <add>, %14, %cst_9 [1] : vector<8x32xf32> to vector<8xf32>
    %16 = vector.shape_cast %15 : vector<8xf32> to vector<8x1xf32>
    %17 = vector.broadcast %3 : f32 to vector<8x1xf32>
    %18 = arith.addf %16, %17 : vector<8x1xf32>
    %19 = arith.index_cast %5 : i32 to index
    %c0_10 = arith.constant 0 : index
    %20 = vector.load %arg6[%19, %c0_10] : memref<32x1xf32, #tpu.memory_space<vmem>>, vector<8x1xf32>
    tpu.vector_store %arg6[%19, %c0_10], %18 {strides = array<i32>} : memref<32x1xf32, #tpu.memory_space<vmem>>, vector<8x1xf32>,
    %c1_i32 = arith.constant 1 : i32
    %c8_i32_11 = arith.constant 8 : i32
    %21 = arith.muli %c1_i32, %c8_i32_11 : i32
    %22 = tpu.assume_multiple %21, 8 : i32
    %23 = arith.index_cast %22 : i32 to index
    %c0_12 = arith.constant 0 : index
    %24 = vector.load %arg1[%23, %c0_12] : memref<32x32xf32, #tpu.memory_space<vmem>>, vector<8x32xf32>
    %cst_13 = arith.constant dense<0.000000e+00> : vector<8x32xf32>
    %25 = tpu.matmul %24, %0, %cst_13 {dimension_numbers = #tpu.dot_dimension_numbers<[1], [0], [0], [1], [0, 0, 1, 1], [], []>} : vector<8x32xf32>, vector<32x32xf32>, vector<8x32xf32> -> vector<8x32xf32>
    %26 = vector.broadcast %1 : vector<1x32xf32> to vector<8x32xf32>
    %27 = arith.addf %25, %26 : vector<8x32xf32>
    %cst_14 = arith.constant 0.000000e+00 : f32
    %28 = vector.broadcast %cst_14 : f32 to vector<8x32xf32>
    %29 = arith.maximumf %27, %28 : vector<8x32xf32>
    %30 = vector.broadcast %2 : vector<1x32xf32> to vector<8x32xf32>
    %31 = arith.mulf %29, %30 : vector<8x32xf32>
    %cst_15 = arith.constant dense<0.000000e+00> : vector<8xf32>
    %32 = vector.multi_reduction <add>, %31, %cst_15 [1] : vector<8x32xf32> to vector<8xf32>
    %33 = vector.shape_cast %32 : vector<8xf32> to vector<8x1xf32>
    %34 = vector.broadcast %3 : f32 to vector<8x1xf32>
    %35 = arith.addf %33, %34 : vector<8x1xf32>
    %36 = arith.index_cast %22 : i32 to index
    %c0_16 = arith.constant 0 : index
    %37 = vector.load %arg6[%36, %c0_16] : memref<32x1xf32, #tpu.memory_space<vmem>>, vector<8x1xf32>
    tpu.vector_store %arg6[%36, %c0_16], %35 {strides = array<i32>} : memref<32x1xf32, #tpu.memory_space<vmem>>, vector<8x1xf32>,
    %c2_i32 = arith.constant 2 : i32
    %c8_i32_17 = arith.constant 8 : i32
    %38 = arith.muli %c2_i32, %c8_i32_17 : i32
    %39 = tpu.assume_multiple %38, 8 : i32
    %40 = arith.index_cast %39 : i32 to index
    %c0_18 = arith.constant 0 : index
    %41 = vector.load %arg1[%40, %c0_18] : memref<32x32xf32, #tpu.memory_space<vmem>>, vector<8x32xf32>
    %cst_19 = arith.constant dense<0.000000e+00> : vector<8x32xf32>
    %42 = tpu.matmul %41, %0, %cst_19 {dimension_numbers = #tpu.dot_dimension_numbers<[1], [0], [0], [1], [0, 0, 1, 1], [], []>} : vector<8x32xf32>, vector<32x32xf32>, vector<8x32xf32> -> vector<8x32xf32>
    %43 = vector.broadcast %1 : vector<1x32xf32> to vector<8x32xf32>
    %44 = arith.addf %42, %43 : vector<8x32xf32>
    %cst_20 = arith.constant 0.000000e+00 : f32
    %45 = vector.broadcast %cst_20 : f32 to vector<8x32xf32>
    %46 = arith.maximumf %44, %45 : vector<8x32xf32>
    %47 = vector.broadcast %2 : vector<1x32xf32> to vector<8x32xf32>
    %48 = arith.mulf %46, %47 : vector<8x32xf32>
    %cst_21 = arith.constant dense<0.000000e+00> : vector<8xf32>
    %49 = vector.multi_reduction <add>, %48, %cst_21 [1] : vector<8x32xf32> to vector<8xf32>
    %50 = vector.shape_cast %49 : vector<8xf32> to vector<8x1xf32>
    %51 = vector.broadcast %3 : f32 to vector<8x1xf32>
    %52 = arith.addf %50, %51 : vector<8x1xf32>
    %53 = arith.index_cast %39 : i32 to index
    %c0_22 = arith.constant 0 : index
    %54 = vector.load %arg6[%53, %c0_22] : memref<32x1xf32, #tpu.memory_space<vmem>>, vector<8x1xf32>
    tpu.vector_store %arg6[%53, %c0_22], %52 {strides = array<i32>} : memref<32x1xf32, #tpu.memory_space<vmem>>, vector<8x1xf32>,
    %c3_i32 = arith.constant 3 : i32
    %c8_i32_23 = arith.constant 8 : i32
    %55 = arith.muli %c3_i32, %c8_i32_23 : i32
    %56 = tpu.assume_multiple %55, 8 : i32
    %57 = arith.index_cast %56 : i32 to index
    %c0_24 = arith.constant 0 : index
    %58 = vector.load %arg1[%57, %c0_24] : memref<32x32xf32, #tpu.memory_space<vmem>>, vector<8x32xf32>
    %cst_25 = arith.constant dense<0.000000e+00> : vector<8x32xf32>
    %59 = tpu.matmul %58, %0, %cst_25 {dimension_numbers = #tpu.dot_dimension_numbers<[1], [0], [0], [1], [0, 0, 1, 1], [], []>} : vector<8x32xf32>, vector<32x32xf32>, vector<8x32xf32> -> vector<8x32xf32>
    %60 = vector.broadcast %1 : vector<1x32xf32> to vector<8x32xf32>
    %61 = arith.addf %59, %60 : vector<8x32xf32>
    %cst_26 = arith.constant 0.000000e+00 : f32
    %62 = vector.broadcast %cst_26 : f32 to vector<8x32xf32>
    %63 = arith.maximumf %61, %62 : vector<8x32xf32>
    %64 = vector.broadcast %2 : vector<1x32xf32> to vector<8x32xf32>
    %65 = arith.mulf %63, %64 : vector<8x32xf32>
    %cst_27 = arith.constant dense<0.000000e+00> : vector<8xf32>
    %66 = vector.multi_reduction <add>, %65, %cst_27 [1] : vector<8x32xf32> to vector<8xf32>
    %67 = vector.shape_cast %66 : vector<8xf32> to vector<8x1xf32>
    %68 = vector.broadcast %3 : f32 to vector<8x1xf32>
    %69 = arith.addf %67, %68 : vector<8x1xf32>
    %70 = arith.index_cast %56 : i32 to index
    %c0_28 = arith.constant 0 : index
    %71 = vector.load %arg6[%70, %c0_28] : memref<32x1xf32, #tpu.memory_space<vmem>>, vector<8x1xf32>
    tpu.vector_store %arg6[%70, %c0_28], %69 {strides = array<i32>} : memref<32x1xf32, #tpu.memory_space<vmem>>, vector<8x1xf32>,
    %c4_i32 = arith.constant 4 : i32
    return
  }
  func.func @transform_0(%arg0: i32) -> (i32, i32) {
    %c0_i32 = arith.constant 0 : i32
    %c0_i32_0 = arith.constant 0 : i32
    return %arg0, %c0_i32 : i32, i32
  }
  func.func @transform_1(%arg0: i32) -> (i32, i32) {
    %c0_i32 = arith.constant 0 : i32
    %c0_i32_0 = arith.constant 0 : i32
    %c0_i32_1 = arith.constant 0 : i32
    return %c0_i32, %c0_i32_0 : i32, i32
  }
  func.func @transform_2(%arg0: i32) -> (i32, i32) {
    %c0_i32 = arith.constant 0 : i32
    %c0_i32_0 = arith.constant 0 : i32
    %c0_i32_1 = arith.constant 0 : i32
    return %c0_i32, %c0_i32_0 : i32, i32
  }
  func.func @transform_3(%arg0: i32) -> (i32, i32) {
    %c0_i32 = arith.constant 0 : i32
    %c0_i32_0 = arith.constant 0 : i32
    %c0_i32_1 = arith.constant 0 : i32
    return %c0_i32, %c0_i32_0 : i32, i32
  }
  func.func @transform_4(%arg0: i32) -> (i32, i32) {
    %c0_i32 = arith.constant 0 : i32
    %c0_i32_0 = arith.constant 0 : i32
    %c0_i32_1 = arith.constant 0 : i32
    return %c0_i32, %c0_i32_0 : i32, i32
  }
  func.func @transform_5(%arg0: i32) -> (i32, i32) {
    %c0_i32 = arith.constant 0 : i32
    %c0_i32_0 = arith.constant 0 : i32
    return %arg0, %c0_i32 : i32, i32
  }
}

</mosaic_0001>

<llo_original>
// kernel: tpu_custom_call.1
$region0: #{tpu_custom_call.1}
  #allocation0 [shape = 'u32[]', space=smem, size = 0x4, offset = 0x4, fixed_abs, tag = 'smem constant byte address 0x4 - core index']
  #allocation1 [shape = 'u32[144,128]{1,0:T(1,128)}', space=vmem, size = 0x12000, scoped, tag = 'internal scratch']
  #allocation2 [shape = 'f32[1,1]{1,0:T(1,128)S(6)}', space=smem, size = 0x200, scoped, tag = 'scoped memory for tpu_custom_call.1']
  %s0 = inlined_call_operand.vmem [shape: f32[44,32], index: 0, kind: input, shape index: {}]
  %s1 = inlined_call_operand.vmem [shape: f32[32,32], index: 1, kind: input, shape index: {}]
  %s2 = inlined_call_operand.vmem [shape: f32[1,32], index: 2, kind: input, shape index: {}]
  %s3 = inlined_call_operand.vmem [shape: f32[1,32], index: 3, kind: input, shape index: {}]
  %s4 = inlined_call_operand.<no memory space> [shape: f32[1,1], index: 4, kind: input, shape index: {}]
  %s5 = inlined_call_operand.vmem [shape: f32[44,1], index: 5, kind: output, shape index: {}]
  %s6 = sld [smem:[#allocation0]]
  $region101: #{tpu_custom_call.1} parent=0
    _
  %s8 = ssub.s32 1, %s6
  %s9 = scalar_select 0, %s8, %s6
  %10 = sst [smem:[#allocation2]] %s4
  $region1: #{tpu_custom_call.1} parent=0
    #allocation3 [shape = 'u8[32768]{0}', space=vmem, size = 0x8000, scoped, tag = 'output window, operand 0']
    loop: start=0, step=1, limit=4
    $region2: #{tpu_custom_call.1} parent=1 // loop_pre_header
      _
    $region3: #{tpu_custom_call.1} parent=1 // loop_header
      %s12 = sphi 0, %s16
      %p13 = scmp.ge.s32.totalorder %s12, 4
      %s22 = sphi 0, %s24
      %s25 = sphi 0, %s22
      %s26 = sphi 0, %s25
      %s42 = sphi 0, %s26
      %s46 = sphi 0, %s46
      %s48 = sphi 0, %s46
      %s49 = sphi 0, %s48
      %s63 = sphi 0, %s49
      %s67 = sphi 0, %s67
      %s69 = sphi 0, %s67
      %s70 = sphi 0, %s69
      %s84 = sphi 0, %s70
      %s88 = sphi 0, %s88
      %s90 = sphi 0, %s88
      %s91 = sphi 0, %s90
      %s105 = sphi 0, %s91
      %s109 = sphi 0, %s109
      %s111 = sphi 0, %s109
      %s112 = sphi 0, %s111
      %s126 = sphi 0, %s112
      %s132 = sphi 0, %s134
      %s135 = sphi 0, %s132
      %s136 = sphi 0, %s135
      %s152 = sphi 0, %s136
    $region4: #{tpu_custom_call.1} parent=1 // loop_header_branch
      %15 = sbr.rel (%p13) target = $region8
    $region5: #{tpu_custom_call.1} parent=1 // loop_body
      %s17 = ssub.s32 %s12, 1
      %s18 = ssub.s32 %s12, 2
      %s19 = sadd.s32 %s12, 1
      %s20 = ssub.s32 %s12, %s19
      %p21 = scmp.eq.s32.totalorder %s20, 0
      %s23 = sadd.s32 %s22, 1
      %s24 = scalar_select %p21, %s22, %s23
      %p27 = pneg %p21
      %p28 = scmp.eq.s32.totalorder %s12, 1
      %p29 = por %p27, %p28
      %p30 = scmp.ne.s32.totalorder %s22, %s25
      %p31 = scmp.eq.s32.totalorder %s12, 0
      %p32 = por %p30, %p31
      %p33 = scmp.ne.s32.totalorder %s22, %s25
      %p34 = scmp.eq.s32.totalorder %s17, 1
      %p35 = por %p33, %p34
      %p36 = scmp.ne.s32.totalorder %s25, %s26
      %p37 = scmp.eq.s32.totalorder %s17, 0
      %p38 = por %p36, %p37
      %p39 = scmp.ne.s32.totalorder %s25, %s26
      %p40 = scmp.eq.s32.totalorder %s18, 1
      %p41 = por %p39, %p40
      %p43 = scmp.ne.s32.totalorder %s26, %s42
      %p44 = scmp.eq.s32.totalorder %s18, 0
      %p45 = por %p43, %p44
      %s47 = sadd.s32 %s46, 1
      %p50 = scmp.eq.s32.totalorder %s12, 1
      %p51 = scmp.ne.s32.totalorder %s46, %s48
      %p52 = scmp.eq.s32.totalorder %s12, 0
      %p53 = por %p51, %p52
      %p54 = scmp.ne.s32.totalorder %s46, %s48
      %p55 = scmp.eq.s32.totalorder %s17, 1
      %p56 = por %p54, %p55
      %p57 = scmp.ne.s32.totalorder %s48, %s49
      %p58 = scmp.eq.s32.totalorder %s17, 0
      %p59 = por %p57, %p58
      %p60 = scmp.ne.s32.totalorder %s48, %s49
      %p61 = scmp.eq.s32.totalorder %s18, 1
      %p62 = por %p60, %p61
      %p64 = scmp.ne.s32.totalorder %s49, %s63
      %p65 = scmp.eq.s32.totalorder %s18, 0
      %p66 = por %p64, %p65
      %s68 = sadd.s32 %s67, 1
      %p71 = scmp.eq.s32.totalorder %s12, 1
      %p72 = scmp.ne.s32.totalorder %s67, %s69
      %p73 = scmp.eq.s32.totalorder %s12, 0
      %p74 = por %p72, %p73
      %p75 = scmp.ne.s32.totalorder %s67, %s69
      %p76 = scmp.eq.s32.totalorder %s17, 1
      %p77 = por %p75, %p76
      %p78 = scmp.ne.s32.totalorder %s69, %s70
      %p79 = scmp.eq.s32.totalorder %s17, 0
      %p80 = por %p78, %p79
      %p81 = scmp.ne.s32.totalorder %s69, %s70
      %p82 = scmp.eq.s32.totalorder %s18, 1
      %p83 = por %p81, %p82
      %p85 = scmp.ne.s32.totalorder %s70, %s84
      %p86 = scmp.eq.s32.totalorder %s18, 0
      %p87 = por %p85, %p86
      %s89 = sadd.s32 %s88, 1
      %p92 = scmp.eq.s32.totalorder %s12, 1
      %p93 = scmp.ne.s32.totalorder %s88, %s90
      %p94 = scmp.eq.s32.totalorder %s12, 0
      %p95 = por %p93, %p94
      %p96 = scmp.ne.s32.totalorder %s88, %s90
      %p97 = scmp.eq.s32.totalorder %s17, 1
      %p98 = por %p96, %p97
      %p99 = scmp.ne.s32.totalorder %s90, %s91
      %p100 = scmp.eq.s32.totalorder %s17, 0
      %p101 = por %p99, %p100
      %p102 = scmp.ne.s32.totalorder %s90, %s91
      %p103 = scmp.eq.s32.totalorder %s18, 1
      %p104 = por %p102, %p103
      %p106 = scmp.ne.s32.totalorder %s91, %s105
      %p107 = scmp.eq.s32.totalorder %s18, 0
      %p108 = por %p106, %p107
      %s110 = sadd.s32 %s109, 1
      %p113 = scmp.eq.s32.totalorder %s12, 1
      %p114 = scmp.ne.s32.totalorder %s109, %s111
      %p115 = scmp.eq.s32.totalorder %s12, 0
      %p116 = por %p114, %p115
      %p117 = scmp.ne.s32.totalorder %s109, %s111
      %p118 = scmp.eq.s32.totalorder %s17, 1
      %p119 = por %p117, %p118
      %p120 = scmp.ne.s32.totalorder %s111, %s112
      %p121 = scmp.eq.s32.totalorder %s17, 0
      %p122 = por %p120, %p121
      %p123 = scmp.ne.s32.totalorder %s111, %s112
      %p124 = scmp.eq.s32.totalorder %s18, 1
      %p125 = por %p123, %p124
      %p127 = scmp.ne.s32.totalorder %s112, %s126
      %p128 = scmp.eq.s32.totalorder %s18, 0
      %p129 = por %p127, %p128
      %s130 = ssub.s32 %s12, %s19
      %p131 = scmp.eq.s32.totalorder %s130, 0
      %s133 = sadd.s32 %s132, 1
      %s134 = scalar_select %p131, %s132, %s133
      %p137 = pneg %p131
      %p138 = scmp.eq.s32.totalorder %s12, 1
      %p139 = por %p137, %p138
      %p140 = scmp.ne.s32.totalorder %s132, %s135
      %p141 = scmp.eq.s32.totalorder %s12, 0
      %p142 = por %p140, %p141
      %p143 = scmp.ne.s32.totalorder %s132, %s135
      %p144 = scmp.eq.s32.totalorder %s17, 1
      %p145 = por %p143, %p144
      %p146 = scmp.ne.s32.totalorder %s135, %s136
      %p147 = scmp.eq.s32.totalorder %s17, 0
      %p148 = por %p146, %p147
      %p149 = scmp.ne.s32.totalorder %s135, %s136
      %p150 = scmp.eq.s32.totalorder %s18, 1
      %p151 = por %p149, %p150
      %p153 = scmp.ne.s32.totalorder %s136, %s152
      %p154 = scmp.eq.s32.totalorder %s18, 0
      %p155 = por %p153, %p154
      %p156 = scmp.le.s32.totalorder 1, %s12
      %p157 = scmp.lt.s32.totalorder %s12, 3
      %p158 = pnand %p156, %p157
      %p159 = pneg %p158
      // Predicated region
      $region9: #{tpu_custom_call.1} parent=5 // pred_check
        _
      $region10: #{tpu_custom_call.1} parent=5 // pred_check_branch
        %161 = sbr.rel (%p158) target = $region12
      $region11: #{tpu_custom_call.1} parent=5 // pred_region
        %s162 = ssub.s32 %s12, 1
        // Predicated region
        $region13: #{tpu_custom_call.1} parent=11 // pred_check
          %p163 = pneg %p59
        $region14: #{tpu_custom_call.1} parent=11 // pred_check_branch
          %165 = sbr.rel (%p163) target = $region16
        $region15: #{tpu_custom_call.1} parent=11 // pred_region
          _
        $region16: #{tpu_custom_call.1} parent=11 // pred_fallthru
          _
        // Predicated region
        $region17: #{tpu_custom_call.1} parent=11 // pred_check
          %p166 = pneg %p80
        $region18: #{tpu_custom_call.1} parent=11 // pred_check_branch
          %168 = sbr.rel (%p166) target = $region20
        $region19: #{tpu_custom_call.1} parent=11 // pred_region
          _
        $region20: #{tpu_custom_call.1} parent=11 // pred_fallthru
          _
        // Predicated region
        $region21: #{tpu_custom_call.1} parent=11 // pred_check
          %p169 = pneg %p101
        $region22: #{tpu_custom_call.1} parent=11 // pred_check_branch
          %171 = sbr.rel (%p169) target = $region24
        $region23: #{tpu_custom_call.1} parent=11 // pred_region
          _
        $region24: #{tpu_custom_call.1} parent=11 // pred_fallthru
          _
        // Predicated region
        $region25: #{tpu_custom_call.1} parent=11 // pred_check
          %p172 = pneg %p122
        $region26: #{tpu_custom_call.1} parent=11 // pred_check_branch
          %174 = sbr.rel (%p172) target = $region28
        $region27: #{tpu_custom_call.1} parent=11 // pred_region
          _
        $region28: #{tpu_custom_call.1} parent=11 // pred_fallthru
          _
      $region12: #{tpu_custom_call.1} parent=5 // pred_fallthru
        _
      %p175 = scmp.lt.s32.totalorder %s12, 2
      // Predicated region
      $region29: #{tpu_custom_call.1} parent=5 // pred_check
        %p176 = pneg %p175
      $region30: #{tpu_custom_call.1} parent=5 // pred_check_branch
        %178 = sbr.rel (%p176) target = $region32
      $region31: #{tpu_custom_call.1} parent=5 // pred_region
        // Predicated region
        $region33: #{tpu_custom_call.1} parent=31 // pred_check
          %p179 = pneg %p32
        $region34: #{tpu_custom_call.1} parent=31 // pred_check_branch
          %181 = sbr.rel (%p179) target = $region36
        $region35: #{tpu_custom_call.1} parent=31 // pred_region
          %s182 = smul.u32 4, %s12
          %s183 = ssub.s32 6, %s182
          %p184 = scmp.lt.s32.totalorder %s183, 4
          %s185 = scalar_select %p184, %s183, 4
          %s186 = smul.u32 128, %s185
          %p187 = scmp.lt.s32.totalorder %s182, 5
          %s188 = scalar_select %p187, %s182, 5
          %s189 = smul.addr %s188, 8
          %s190 = scalar_lea.vmem %s0, %s189
          %s191 = smul.u32 4, %s12
          %s192 = ssub.s32 6, %s191
          %p193 = scmp.lt.s32.totalorder %s192, 4
          %s194 = scalar_select %p193, %s192, 4
          %s195 = smul.u32 128, %s194
        $region36: #{tpu_custom_call.1} parent=31 // pred_fallthru
          _
      $region32: #{tpu_custom_call.1} parent=5 // pred_fallthru
        _
      %p196 = scmp.le.s32.totalorder 1, %s12
      %p197 = scmp.lt.s32.totalorder %s12, 3
      %p198 = pnand %p196, %p197
      %p199 = pneg %p198
      // Predicated region
      $region37: #{tpu_custom_call.1} parent=5 // pred_check
        _
      $region38: #{tpu_custom_call.1} parent=5 // pred_check_branch
        %201 = sbr.rel (%p198) target = $region40
      $region39: #{tpu_custom_call.1} parent=5 // pred_region
        %s202 = ssub.s32 %s12, 1
        %s203 = smul.u32 4, %s17
        %s204 = ssub.s32 6, %s203
        %p205 = scmp.lt.s32.totalorder %s204, 4
        %s206 = scalar_select %p205, %s204, 4
        %s207 = smul.u32 128, %s206
        %p208 = scmp.lt.s32.totalorder %s203, 5
        %s209 = scalar_select %p208, %s203, 5
        %s210 = smul.addr %s209, 8
        %s211 = scalar_lea.vmem %s0, %s210
        %p212 = pneg %p38
        %p213 = pneg %p35
        %p214 = pneg %p59
        %p215 = pneg %p56
        %p216 = pneg %p80
        %p217 = pneg %p77
        %p218 = pneg %p101
        %p219 = pneg %p98
        %p220 = pneg %p122
        %p221 = pneg %p119
        %p222 = pneg %p148
        %p223 = pneg %p145
        %s224 = sand.u32 %s135, 1
        %s225 = sand.u32 %s135, 1
        %s226 = smul.addr %s225, 32
        %s227 = scalar_lea.vmem [#allocation3], %s226
        %s228 = smul.u32 4, %s17
        %s229 = ssub.s32 6, %s228
        %p230 = scmp.lt.s32.totalorder %s229, 4
        %s231 = scalar_select %p230, %s229, 4
        %s232 = smul.u32 128, %s231
        %p233 = scmp.lt.s32.totalorder %s228, 5
        %s234 = scalar_select %p233, %s228, 5
        %s235 = smul.addr %s234, 8
        %s236 = scalar_lea.vmem %s0, %s235
        %s237 = smul.u32 4, %s17
        %s238 = ssub.s32 6, %s237
        %p239 = scmp.lt.s32.totalorder %s238, 4
        %s240 = scalar_select %p239, %s238, 4
        %s241 = smul.u32 128, %s240
        %s242 = smul.u32 4, %s17
        %s243 = ssub.s32 6, %s242
        %p244 = scmp.lt.s32.totalorder %s243, 4
        %s245 = scalar_select %p244, %s243, 4
        %s246 = smul.u32 128, %s245
        %v247 = vld [vmem:[%s1] sm:$0xff]
        %v248 = vld [vmem:[%s1 + $0x8] sm:$0xff]
        %v249 = vld [vmem:[%s1 + $0x10] sm:$0xff]
        %v250 = vld [vmem:[%s1 + $0x18] sm:$0xff]
        %v251 = vld [vmem:[%s2] sm:$0x1]
        %v252 = vld [vmem:[%s3] sm:$0x1]
        %s253 = sld [smem:[#allocation2]]
        %v254 = vld [vmem:[%s236] sm:$0xff]
        %v256 = vlaneseq
        %v257 = vshrl.u32 %v256, 7
        %v258 = vsub.s32 0, %v257
        %v259 = vrot.slane %v251, %v258
        %vm261 = vcmask 261120
        %v263 = vsel %vm261, %v254, 0
        %265 = vmatprep.subr.mxu0 0.0
        %266 = vmatpush1.msra.mxu0 %v247
        %267 = vmatprep.subr.mxu0 0.0
        %268 = vmatpush1.msra.mxu0 %v248
        %269 = vmatprep.subr.mxu0 0.0
        %270 = vmatpush1.msra.mxu0 %v249
        %271 = vmatprep.subr.mxu0 0.0
        %272 = vmatpush1.msra.mxu0 %v250
        %273 = vmatprep.subr.mxu0 0.0
        %274 = vmatpush1.msra.mxu0 0.0
        %275 = vmatprep.subr.mxu0 0.0
        %276 = vmatpush1.msra.mxu0 0.0
        %277 = vmatprep.subr.mxu0 0.0
        %278 = vmatpush1.msra.mxu0 0.0
        %279 = vmatprep.subr.mxu0 0.0
        %280 = vmatpush1.msra.mxu0 0.0
        %281 = vmatprep.subr.mxu0 0.0
        %282 = vmatpush1.msra.mxu0 0.0
        %283 = vmatprep.subr.mxu0 0.0
        %284 = vmatpush1.msra.mxu0 0.0
        %285 = vmatprep.subr.mxu0 0.0
        %286 = vmatpush1.msra.mxu0 0.0
        %287 = vmatprep.subr.mxu0 0.0
        %288 = vmatpush1.msra.mxu0 0.0
        %289 = vmatprep.subr.mxu0 0.0
        %290 = vmatpush1.msra.mxu0 0.0
        %291 = vmatprep.subr.mxu0 0.0
        %292 = vmatpush1.msra.mxu0 0.0
        %293 = vmatprep.subr.mxu0 0.0
        %294 = vmatpush1.msra.mxu0 0.0
        %295 = vmatprep.subr.mxu0 0.0
        %296 = vmatpush1.msra.mxu0 0.0
        %297 = vmatprep.subr.mxu0 0.0
        %298 = vmatpush1.msra.mxu0 0.0
        %299 = vmatprep.subr.mxu0 0.0
        %300 = vmatpush1.msra.mxu0 0.0
        %301 = vmatprep.subr.mxu0 0.0
        %302 = vmatpush1.msra.mxu0 0.0
        %303 = vmatprep.subr.mxu0 0.0
        %304 = vmatpush1.msra.mxu0 0.0
        %305 = vmatprep.subr.mxu0 0.0
        %306 = vmatpush1.msra.mxu0 0.0
        %307 = vmatprep.subr.mxu0 0.0
        %308 = vmatpush1.msra.mxu0 0.0
        %309 = vmatprep.subr.mxu0 0.0
        %310 = vmatpush1.msra.mxu0 0.0
        %311 = vmatprep.subr.mxu0 0.0
        %312 = vmatpush1.msra.mxu0 0.0
        %313 = vmatprep.subr.mxu0 0.0
        %314 = vmatpush1.msra.mxu0 0.0
        %315 = vmatprep.subr.mxu0 0.0
        %316 = vmatpush1.msra.mxu0 0.0
        %317 = vmatprep.subr.mxu0 0.0
        %318 = vmatpush1.msra.mxu0 0.0
        %319 = vmatprep.subr.mxu0 0.0
        %320 = vmatpush1.msra.mxu0 0.0
        %321 = vmatprep.subr.mxu0 0.0
        %322 = vmatpush1.msra.mxu0 0.0
        %323 = vmatprep.subr.mxu0 0.0
        %324 = vmatpush1.msra.mxu0 0.0
        %325 = vmatprep.subr.mxu0 0.0
        %326 = vmatpush1.msra.mxu0 0.0
        %327 = vmatprep.subr.mxu0 0.0
        %328 = vmatpush1.msra.mxu0 0.0
        %329 = vmatprep.mubr.f32.mxu0 0.0
        %330 = vmatmul.mubr.f32.gmra.mrb[0].mxu0 %v263
        %v331 = vpop.f32.mrb[0].mxu0
        %v332 = vadd.f32 %v259, %v331
        %v333 = vpop.f32.mrb[0].mxu0
        %334 = vdwg.mxu0
        %v335 = vmax.f32 %v332, 0.0
        %v337 = vlaneseq
        %v338 = vshrl.u32 %v337, 7
        %v339 = vsub.s32 0, %v338
        %v340 = vrot.slane %v252, %v339
        %v342 = vmul.f32 %v335, %v340
        %v343 = vsel %vm261, %v342, 0.0
        %344 = vadd.xlane.f32.xlu0 %v343
        %v345 = vpop.xlane.xlu0 %344
        %v346 = vstv %s253
        %v347 = vadd.f32 %v345, %v346
        %vm348 = vcmask 7168
        %349 = vst.msk [vmem:[%s227] sm:$0xff] %vm348, %v347
        %s350 = scalar_lea.vmem %s236, 8
        %v351 = vld [vmem:[%s350] sm:$0xff]
        %v353 = vsel %vm261, %v351, 0
        %355 = vmatprep.subr.mxu0 0.0
        %356 = vmatpush1.msra.mxu0 %v247
        %357 = vmatprep.subr.mxu0 0.0
        %358 = vmatpush1.msra.mxu0 %v248
        %359 = vmatprep.subr.mxu0 0.0
        %360 = vmatpush1.msra.mxu0 %v249
        %361 = vmatprep.subr.mxu0 0.0
        %362 = vmatpush1.msra.mxu0 %v250
        %363 = vmatprep.subr.mxu0 0.0
        %364 = vmatpush1.msra.mxu0 0.0
        %365 = vmatprep.subr.mxu0 0.0
        %366 = vmatpush1.msra.mxu0 0.0
        %367 = vmatprep.subr.mxu0 0.0
        %368 = vmatpush1.msra.mxu0 0.0
        %369 = vmatprep.subr.mxu0 0.0
        %370 = vmatpush1.msra.mxu0 0.0
        %371 = vmatprep.subr.mxu0 0.0
        %372 = vmatpush1.msra.mxu0 0.0
        %373 = vmatprep.subr.mxu0 0.0
        %374 = vmatpush1.msra.mxu0 0.0
        %375 = vmatprep.subr.mxu0 0.0
        %376 = vmatpush1.msra.mxu0 0.0
        %377 = vmatprep.subr.mxu0 0.0
        %378 = vmatpush1.msra.mxu0 0.0
        %379 = vmatprep.subr.mxu0 0.0
        %380 = vmatpush1.msra.mxu0 0.0
        %381 = vmatprep.subr.mxu0 0.0
        %382 = vmatpush1.msra.mxu0 0.0
        %383 = vmatprep.subr.mxu0 0.0
        %384 = vmatpush1.msra.mxu0 0.0
        %385 = vmatprep.subr.mxu0 0.0
        %386 = vmatpush1.msra.mxu0 0.0
        %387 = vmatprep.subr.mxu0 0.0
        %388 = vmatpush1.msra.mxu0 0.0
        %389 = vmatprep.subr.mxu0 0.0
        %390 = vmatpush1.msra.mxu0 0.0
        %391 = vmatprep.subr.mxu0 0.0
        %392 = vmatpush1.msra.mxu0 0.0
        %393 = vmatprep.subr.mxu0 0.0
        %394 = vmatpush1.msra.mxu0 0.0
        %395 = vmatprep.subr.mxu0 0.0
        %396 = vmatpush1.msra.mxu0 0.0
        %397 = vmatprep.subr.mxu0 0.0
        %398 = vmatpush1.msra.mxu0 0.0
        %399 = vmatprep.subr.mxu0 0.0
        %400 = vmatpush1.msra.mxu0 0.0
        %401 = vmatprep.subr.mxu0 0.0
        %402 = vmatpush1.msra.mxu0 0.0
        %403 = vmatprep.subr.mxu0 0.0
        %404 = vmatpush1.msra.mxu0 0.0
        %405 = vmatprep.subr.mxu0 0.0
        %406 = vmatpush1.msra.mxu0 0.0
        %407 = vmatprep.subr.mxu0 0.0
        %408 = vmatpush1.msra.mxu0 0.0
        %409 = vmatprep.subr.mxu0 0.0
        %410 = vmatpush1.msra.mxu0 0.0
        %411 = vmatprep.subr.mxu0 0.0
        %412 = vmatpush1.msra.mxu0 0.0
        %413 = vmatprep.subr.mxu0 0.0
        %414 = vmatpush1.msra.mxu0 0.0
        %415 = vmatprep.subr.mxu0 0.0
        %416 = vmatpush1.msra.mxu0 0.0
        %417 = vmatprep.subr.mxu0 0.0
        %418 = vmatpush1.msra.mxu0 0.0
        %419 = vmatprep.mubr.f32.mxu0 0.0
        %420 = vmatmul.mubr.f32.gmra.mrb[0].mxu0 %v353
        %v421 = vpop.f32.mrb[0].mxu0
        %v422 = vadd.f32 %v259, %v421
        %v423 = vpop.f32.mrb[0].mxu0
        %424 = vdwg.mxu0
        %v425 = vmax.f32 %v422, 0.0
        %v426 = vmul.f32 %v425, %v340
        %v427 = vsel %vm261, %v426, 0.0
        %428 = vadd.xlane.f32.xlu0 %v427
        %v429 = vpop.xlane.xlu0 %428
        %v430 = vadd.f32 %v429, %v346
        %s431 = scalar_lea.vmem %s227, 8 [#allocation3]
        %432 = vst.msk [vmem:[%s431] sm:$0xff] %vm348, %v430
        %s433 = scalar_lea.vmem %s236, 16
        %v434 = vld [vmem:[%s433] sm:$0xff]
        %v436 = vsel %vm261, %v434, 0
        %438 = vmatprep.subr.mxu0 0.0
        %439 = vmatpush1.msra.mxu0 %v247
        %440 = vmatprep.subr.mxu0 0.0
        %441 = vmatpush1.msra.mxu0 %v248
        %442 = vmatprep.subr.mxu0 0.0
        %443 = vmatpush1.msra.mxu0 %v249
        %444 = vmatprep.subr.mxu0 0.0
        %445 = vmatpush1.msra.mxu0 %v250
        %446 = vmatprep.subr.mxu0 0.0
        %447 = vmatpush1.msra.mxu0 0.0
        %448 = vmatprep.subr.mxu0 0.0
        %449 = vmatpush1.msra.mxu0 0.0
        %450 = vmatprep.subr.mxu0 0.0
        %451 = vmatpush1.msra.mxu0 0.0
        %452 = vmatprep.subr.mxu0 0.0
        %453 = vmatpush1.msra.mxu0 0.0
        %454 = vmatprep.subr.mxu0 0.0
        %455 = vmatpush1.msra.mxu0 0.0
        %456 = vmatprep.subr.mxu0 0.0
        %457 = vmatpush1.msra.mxu0 0.0
        %458 = vmatprep.subr.mxu0 0.0
        %459 = vmatpush1.msra.mxu0 0.0
        %460 = vmatprep.subr.mxu0 0.0
        %461 = vmatpush1.msra.mxu0 0.0
        %462 = vmatprep.subr.mxu0 0.0
        %463 = vmatpush1.msra.mxu0 0.0
        %464 = vmatprep.subr.mxu0 0.0
        %465 = vmatpush1.msra.mxu0 0.0
        %466 = vmatprep.subr.mxu0 0.0
        %467 = vmatpush1.msra.mxu0 0.0
        %468 = vmatprep.subr.mxu0 0.0
        %469 = vmatpush1.msra.mxu0 0.0
        %470 = vmatprep.subr.mxu0 0.0
        %471 = vmatpush1.msra.mxu0 0.0
        %472 = vmatprep.subr.mxu0 0.0
        %473 = vmatpush1.msra.mxu0 0.0
        %474 = vmatprep.subr.mxu0 0.0
        %475 = vmatpush1.msra.mxu0 0.0
        %476 = vmatprep.subr.mxu0 0.0
        %477 = vmatpush1.msra.mxu0 0.0
        %478 = vmatprep.subr.mxu0 0.0
        %479 = vmatpush1.msra.mxu0 0.0
        %480 = vmatprep.subr.mxu0 0.0
        %481 = vmatpush1.msra.mxu0 0.0
        %482 = vmatprep.subr.mxu0 0.0
        %483 = vmatpush1.msra.mxu0 0.0
        %484 = vmatprep.subr.mxu0 0.0
        %485 = vmatpush1.msra.mxu0 0.0
        %486 = vmatprep.subr.mxu0 0.0
        %487 = vmatpush1.msra.mxu0 0.0
        %488 = vmatprep.subr.mxu0 0.0
        %489 = vmatpush1.msra.mxu0 0.0
        %490 = vmatprep.subr.mxu0 0.0
        %491 = vmatpush1.msra.mxu0 0.0
        %492 = vmatprep.subr.mxu0 0.0
        %493 = vmatpush1.msra.mxu0 0.0
        %494 = vmatprep.subr.mxu0 0.0
        %495 = vmatpush1.msra.mxu0 0.0
        %496 = vmatprep.subr.mxu0 0.0
        %497 = vmatpush1.msra.mxu0 0.0
        %498 = vmatprep.subr.mxu0 0.0
        %499 = vmatpush1.msra.mxu0 0.0
        %500 = vmatprep.subr.mxu0 0.0
        %501 = vmatpush1.msra.mxu0 0.0
        %502 = vmatprep.mubr.f32.mxu0 0.0
        %503 = vmatmul.mubr.f32.gmra.mrb[0].mxu0 %v436
        %v504 = vpop.f32.mrb[0].mxu0
        %v505 = vadd.f32 %v259, %v504
        %v506 = vpop.f32.mrb[0].mxu0
        %507 = vdwg.mxu0
        %v508 = vmax.f32 %v505, 0.0
        %v509 = vmul.f32 %v508, %v340
        %v510 = vsel %vm261, %v509, 0.0
        %511 = vadd.xlane.f32.xlu0 %v510
        %v512 = vpop.xlane.xlu0 %511
        %v513 = vadd.f32 %v512, %v346
        %s514 = scalar_lea.vmem %s227, 16 [#allocation3]
        %515 = vst.msk [vmem:[%s514] sm:$0xff] %vm348, %v513
        %s516 = scalar_lea.vmem %s236, 24
        %v517 = vld [vmem:[%s516] sm:$0xff]
        %v519 = vsel %vm261, %v517, 0
        %521 = vmatprep.subr.mxu0 0.0
        %522 = vmatpush1.msra.mxu0 %v247
        %523 = vmatprep.subr.mxu0 0.0
        %524 = vmatpush1.msra.mxu0 %v248
        %525 = vmatprep.subr.mxu0 0.0
        %526 = vmatpush1.msra.mxu0 %v249
        %527 = vmatprep.subr.mxu0 0.0
        %528 = vmatpush1.msra.mxu0 %v250
        %529 = vmatprep.subr.mxu0 0.0
        %530 = vmatpush1.msra.mxu0 0.0
        %531 = vmatprep.subr.mxu0 0.0
        %532 = vmatpush1.msra.mxu0 0.0
        %533 = vmatprep.subr.mxu0 0.0
        %534 = vmatpush1.msra.mxu0 0.0
        %535 = vmatprep.subr.mxu0 0.0
        %536 = vmatpush1.msra.mxu0 0.0
        %537 = vmatprep.subr.mxu0 0.0
        %538 = vmatpush1.msra.mxu0 0.0
        %539 = vmatprep.subr.mxu0 0.0
        %540 = vmatpush1.msra.mxu0 0.0
        %541 = vmatprep.subr.mxu0 0.0
        %542 = vmatpush1.msra.mxu0 0.0
        %543 = vmatprep.subr.mxu0 0.0
        %544 = vmatpush1.msra.mxu0 0.0
        %545 = vmatprep.subr.mxu0 0.0
        %546 = vmatpush1.msra.mxu0 0.0
        %547 = vmatprep.subr.mxu0 0.0
        %548 = vmatpush1.msra.mxu0 0.0
        %549 = vmatprep.subr.mxu0 0.0
        %550 = vmatpush1.msra.mxu0 0.0
        %551 = vmatprep.subr.mxu0 0.0
        %552 = vmatpush1.msra.mxu0 0.0
        %553 = vmatprep.subr.mxu0 0.0
        %554 = vmatpush1.msra.mxu0 0.0
        %555 = vmatprep.subr.mxu0 0.0
        %556 = vmatpush1.msra.mxu0 0.0
        %557 = vmatprep.subr.mxu0 0.0
        %558 = vmatpush1.msra.mxu0 0.0
        %559 = vmatprep.subr.mxu0 0.0
        %560 = vmatpush1.msra.mxu0 0.0
        %561 = vmatprep.subr.mxu0 0.0
        %562 = vmatpush1.msra.mxu0 0.0
        %563 = vmatprep.subr.mxu0 0.0
        %564 = vmatpush1.msra.mxu0 0.0
        %565 = vmatprep.subr.mxu0 0.0
        %566 = vmatpush1.msra.mxu0 0.0
        %567 = vmatprep.subr.mxu0 0.0
        %568 = vmatpush1.msra.mxu0 0.0
        %569 = vmatprep.subr.mxu0 0.0
        %570 = vmatpush1.msra.mxu0 0.0
        %571 = vmatprep.subr.mxu0 0.0
        %572 = vmatpush1.msra.mxu0 0.0
        %573 = vmatprep.subr.mxu0 0.0
        %574 = vmatpush1.msra.mxu0 0.0
        %575 = vmatprep.subr.mxu0 0.0
        %576 = vmatpush1.msra.mxu0 0.0
        %577 = vmatprep.subr.mxu0 0.0
        %578 = vmatpush1.msra.mxu0 0.0
        %579 = vmatprep.subr.mxu0 0.0
        %580 = vmatpush1.msra.mxu0 0.0
        %581 = vmatprep.subr.mxu0 0.0
        %582 = vmatpush1.msra.mxu0 0.0
        %583 = vmatprep.subr.mxu0 0.0
        %584 = vmatpush1.msra.mxu0 0.0
        %585 = vmatprep.mubr.f32.mxu0 0.0
        %586 = vmatmul.mubr.f32.gmra.mrb[0].mxu0 %v519
        %v587 = vpop.f32.mrb[0].mxu0
        %v588 = vadd.f32 %v259, %v587
        %v589 = vpop.f32.mrb[0].mxu0
        %590 = vdwg.mxu0
        %v591 = vmax.f32 %v588, 0.0
        %v592 = vmul.f32 %v591, %v340
        %v593 = vsel %vm261, %v592, 0.0
        %594 = vadd.xlane.f32.xlu0 %v593
        %v595 = vpop.xlane.xlu0 %594
        %v596 = vadd.f32 %v595, %v346
        %s597 = scalar_lea.vmem %s227, 24 [#allocation3]
        %598 = vst.msk [vmem:[%s597] sm:$0xff] %vm348, %v596
        %s599 = sand.u32 %s135, 1
        %s600 = sand.u32 %s135, 1
        %s601 = smul.addr %s600, 32
        %s602 = scalar_lea.vmem [#allocation3], %s601
        // Predicated region
        $region41: #{tpu_custom_call.1} parent=39 // pred_check
          %p603 = pneg %p145
        $region42: #{tpu_custom_call.1} parent=39 // pred_check_branch
          %605 = sbr.rel (%p603) target = $region44
        $region43: #{tpu_custom_call.1} parent=39 // pred_region
          %s606 = smul.u32 4, %s17
          %s607 = ssub.s32 6, %s606
          %p608 = scmp.lt.s32.totalorder %s607, 4
          %s609 = scalar_select %p608, %s607, 4
          %s610 = smul.u32 128, %s609
          %p611 = scmp.ne.s32.totalorder 0, %s610
          %s612 = smul.addr %s606, 8
          %s613 = scalar_lea.vmem %s5, %s612
          // Predicated region
          $region45: #{tpu_custom_call.1} parent=43 // pred_check
            %p614 = pneg %p611
          $region46: #{tpu_custom_call.1} parent=43 // pred_check_branch
            %616 = sbr.rel (%p614) target = $region48
          $region47: #{tpu_custom_call.1} parent=43 // pred_region
            // Predicated region
            $region49: #{tpu_custom_call.1} parent=47 // pred_check
              _
            $region50: #{tpu_custom_call.1} parent=47 // pred_check_branch
              %618 = sbr.rel (0) target = $region52
            $region51: #{tpu_custom_call.1} parent=47 // pred_region
              // Predicated region
              $region71: #{tpu_custom_call.1} parent=51 // pred_check
                _
              $region72: #{tpu_custom_call.1} parent=51 // pred_check_branch
                %673 = sbr.rel (0) target = $region74
              $region73: #{tpu_custom_call.1} parent=51 // pred_region
                %s674 = sshrl.u32 %s609, 2
                // While loop
                $region75: #{tpu_custom_call.1} parent=73 // loop_pre_header
                  _
                $region76: #{tpu_custom_call.1} parent=73 // loop_header
                  %s676 = sphi 0, %s678
                  %p677 = scmp.ge.s32.totalorder %s676, %s674
                  %s681 = sphi 0, %s694
                  %s682 = sphi %s602, %s697
                  %s683 = sphi %s613, %s698
                $region77: #{tpu_custom_call.1} parent=73 // loop_header_branch
                  %680 = sbr.rel (%p677) target = $region81
                $region78: #{tpu_custom_call.1} parent=73 // loop_body
                  %v684 = vld [vmem:[%s682] sm:$0xff]
                  %685 = vst [vmem:[%s683] sm:$0xff] %v684
                  %v686 = vld [vmem:[%s682 + $0x8] sm:$0xff]
                  %687 = vst [vmem:[%s683 + $0x8] sm:$0xff] %v686
                  %v688 = vld [vmem:[%s682 + $0x10] sm:$0xff]
                  %689 = vst [vmem:[%s683 + $0x10] sm:$0xff] %v688
                  %v690 = vld [vmem:[%s682 + $0x18] sm:$0xff]
                  %691 = vst [vmem:[%s683 + $0x18] sm:$0xff] %v690
                  %s692 = sadd.s32 1, %s681
                  %p693 = scmp.ge.s32.totalorder %s692, %s674
                  %s694 = scalar_select %p693, 0, %s692
                  %s695 = smul.u32 %s694, 32
                  %s696 = smul.u32 %s694, 32
                  %s697 = scalar_lea.vmem %s602, %s695 [#allocation3]
                  %s698 = scalar_lea.vmem %s613, %s696
                $region79: #{tpu_custom_call.1} parent=73 // loop_footer
                  %s678 = sadd.s32 %s676, 1
                $region80: #{tpu_custom_call.1} parent=73 // loop_footer_branch
                  %675 = sbr.rel target = $region76
                $region81: #{tpu_custom_call.1} parent=73 // loop_exit
                  _
                %s699 = sshrl.u32 %s609, 2
                %s700 = sand.u32 %s609, 3
                %s701 = smul.u32 %s699, 4
                %s702 = smul.u32 8, %s701
                %s703 = scalar_lea.vmem %s602, %s702 [#allocation3]
                %s704 = smul.u32 8, %s701
                %s705 = scalar_lea.vmem %s613, %s704
                // While loop
                $region82: #{tpu_custom_call.1} parent=73 // loop_pre_header
                  _
                $region83: #{tpu_custom_call.1} parent=73 // loop_header
                  %s707 = sphi 0, %s709
                  %p708 = scmp.ge.s32.totalorder %s707, %s700
                  %s712 = sphi 0, %s719
                  %s713 = sphi %s703, %s722
                  %s714 = sphi %s705, %s723
                $region84: #{tpu_custom_call.1} parent=73 // loop_header_branch
                  %711 = sbr.rel (%p708) target = $region88
                $region85: #{tpu_custom_call.1} parent=73 // loop_body
                  %v715 = vld [vmem:[%s713] sm:$0xff]
                  %716 = vst [vmem:[%s714] sm:$0xff] %v715
                  %s717 = sadd.s32 1, %s712
                  %p718 = scmp.ge.s32.totalorder %s717, %s700
                  %s719 = scalar_select %p718, 0, %s717
                  %s720 = smul.u32 %s719, 8
                  %s721 = smul.u32 %s719, 8
                  %s722 = scalar_lea.vmem %s703, %s720 [#allocation3]
                  %s723 = scalar_lea.vmem %s705, %s721
                $region86: #{tpu_custom_call.1} parent=73 // loop_footer
                  %s709 = sadd.s32 %s707, 1
                $region87: #{tpu_custom_call.1} parent=73 // loop_footer_branch
                  %706 = sbr.rel target = $region83
                $region88: #{tpu_custom_call.1} parent=73 // loop_exit
                  _
              $region74: #{tpu_custom_call.1} parent=51 // pred_fallthru
                _
              // Predicated region
              $region89: #{tpu_custom_call.1} parent=51 // pred_check
                _
              $region90: #{tpu_custom_call.1} parent=51 // pred_check_branch
                %725 = sbr.rel target = $region92
              $region91: #{tpu_custom_call.1} parent=51 // pred_region
                _
              $region92: #{tpu_custom_call.1} parent=51 // pred_fallthru
                _
            $region52: #{tpu_custom_call.1} parent=47 // pred_fallthru
              _
            // Predicated region
            $region53: #{tpu_custom_call.1} parent=47 // pred_check
              _
            $region54: #{tpu_custom_call.1} parent=47 // pred_check_branch
              %620 = sbr.rel target = $region56
            $region55: #{tpu_custom_call.1} parent=47 // pred_region
              %s622 = sshrl.u32 %s609, 2
              // While loop
              $region57: #{tpu_custom_call.1} parent=55 // loop_pre_header
                _
              $region58: #{tpu_custom_call.1} parent=55 // loop_header
                %s624 = sphi 0, %s626
                %p625 = scmp.ge.s32.totalorder %s624, %s622
                %s629 = sphi 0, %s642
                %s630 = sphi %s602, %s645
                %s631 = sphi %s613, %s646
              $region59: #{tpu_custom_call.1} parent=55 // loop_header_branch
                %628 = sbr.rel (%p625) target = $region63
              $region60: #{tpu_custom_call.1} parent=55 // loop_body
                %v632 = vld [vmem:[%s630] sm:$0xff]
                %633 = vst [vmem:[%s631] sm:$0xff] %v632
                %v634 = vld [vmem:[%s630 + $0x8] sm:$0xff]
                %635 = vst [vmem:[%s631 + $0x8] sm:$0xff] %v634
                %v636 = vld [vmem:[%s630 + $0x10] sm:$0xff]
                %637 = vst [vmem:[%s631 + $0x10] sm:$0xff] %v636
                %v638 = vld [vmem:[%s630 + $0x18] sm:$0xff]
                %639 = vst [vmem:[%s631 + $0x18] sm:$0xff] %v638
                %s640 = sadd.s32 1, %s629
                %p641 = scmp.ge.s32.totalorder %s640, %s622
                %s642 = scalar_select %p641, 0, %s640
                %s643 = smul.u32 %s642, 32
                %s644 = smul.u32 %s642, 32
                %s645 = scalar_lea.vmem %s602, %s643 [#allocation3]
                %s646 = scalar_lea.vmem %s613, %s644
              $region61: #{tpu_custom_call.1} parent=55 // loop_footer
                %s626 = sadd.s32 %s624, 1
              $region62: #{tpu_custom_call.1} parent=55 // loop_footer_branch
                %623 = sbr.rel target = $region58
              $region63: #{tpu_custom_call.1} parent=55 // loop_exit
                _
              %s647 = sshrl.u32 %s609, 2
              %s648 = sand.u32 %s609, 3
              %s649 = smul.u32 %s647, 4
              %s650 = smul.u32 8, %s649
              %s651 = scalar_lea.vmem %s602, %s650 [#allocation3]
              %s652 = smul.u32 8, %s649
              %s653 = scalar_lea.vmem %s613, %s652
              // While loop
              $region64: #{tpu_custom_call.1} parent=55 // loop_pre_header
                _
              $region65: #{tpu_custom_call.1} parent=55 // loop_header
                %s655 = sphi 0, %s657
                %p656 = scmp.ge.s32.totalorder %s655, %s648
                %s660 = sphi 0, %s667
                %s661 = sphi %s651, %s670
                %s662 = sphi %s653, %s671
              $region66: #{tpu_custom_call.1} parent=55 // loop_header_branch
                %659 = sbr.rel (%p656) target = $region70
              $region67: #{tpu_custom_call.1} parent=55 // loop_body
                %v663 = vld [vmem:[%s661] sm:$0xff]
                %664 = vst [vmem:[%s662] sm:$0xff] %v663
                %s665 = sadd.s32 1, %s660
                %p666 = scmp.ge.s32.totalorder %s665, %s648
                %s667 = scalar_select %p666, 0, %s665
                %s668 = smul.u32 %s667, 8
                %s669 = smul.u32 %s667, 8
                %s670 = scalar_lea.vmem %s651, %s668 [#allocation3]
                %s671 = scalar_lea.vmem %s653, %s669
              $region68: #{tpu_custom_call.1} parent=55 // loop_footer
                %s657 = sadd.s32 %s655, 1
              $region69: #{tpu_custom_call.1} parent=55 // loop_footer_branch
                %654 = sbr.rel target = $region65
              $region70: #{tpu_custom_call.1} parent=55 // loop_exit
                _
            $region56: #{tpu_custom_call.1} parent=47 // pred_fallthru
              _
          $region48: #{tpu_custom_call.1} parent=43 // pred_fallthru
            _
          %726 = vnop
        $region44: #{tpu_custom_call.1} parent=39 // pred_fallthru
          _
      $region40: #{tpu_custom_call.1} parent=5 // pred_fallthru
        _
      %p727 = scmp.le.s32.totalorder 2, %s12
      // Predicated region
      $region93: #{tpu_custom_call.1} parent=5 // pred_check
        %p728 = pneg %p727
      $region94: #{tpu_custom_call.1} parent=5 // pred_check_branch
        %730 = sbr.rel (%p728) target = $region96
      $region95: #{tpu_custom_call.1} parent=5 // pred_region
        %s731 = ssub.s32 %s12, 2
        // Predicated region
        $region97: #{tpu_custom_call.1} parent=95 // pred_check
          %p732 = pneg %p151
        $region98: #{tpu_custom_call.1} parent=95 // pred_check_branch
          %734 = sbr.rel (%p732) target = $region100
        $region99: #{tpu_custom_call.1} parent=95 // pred_region
          %s735 = sand.u32 %s136, 1
          %s736 = sand.u32 %s136, 1
          %s737 = smul.addr %s736, 32
          %s738 = scalar_lea.vmem [#allocation3], %s737
        $region100: #{tpu_custom_call.1} parent=95 // pred_fallthru
          _
      $region96: #{tpu_custom_call.1} parent=5 // pred_fallthru
        _
    $region6: #{tpu_custom_call.1} parent=1 // loop_footer
      %s16 = sadd.s32 1, %s12
    $region7: #{tpu_custom_call.1} parent=1 // loop_footer_branch
      %11 = sbr.rel target = $region3
    $region8: #{tpu_custom_call.1} parent=1 // loop_exit
      _

// kernel: tpu_custom_call.1
$region0: #{tpu_custom_call.1}
  #allocation0 [shape = 'u32[]', space=smem, size = 0x4, offset = 0x4, fixed_abs, tag = 'smem constant byte address 0x4 - core index']
  #allocation1 [shape = 'u32[144,128]{1,0:T(1,128)}', space=vmem, size = 0x12000, scoped, tag = 'internal scratch']
  #allocation2 [shape = 'f32[1,1]{1,0:T(1,128)S(6)}', space=smem, size = 0x200, scoped, tag = 'scoped memory for tpu_custom_call.1']
  %s0 = inlined_call_operand.vmem [shape: f32[44,32], index: 0, kind: input, shape index: {}]
  %s1 = inlined_call_operand.vmem [shape: f32[32,32], index: 1, kind: input, shape index: {}]
  %s2 = inlined_call_operand.vmem [shape: f32[1,32], index: 2, kind: input, shape index: {}]
  %s3 = inlined_call_operand.vmem [shape: f32[1,32], index: 3, kind: input, shape index: {}]
  %s4 = inlined_call_operand.<no memory space> [shape: f32[1,1], index: 4, kind: input, shape index: {}]
  %s5 = inlined_call_operand.vmem [shape: f32[44,1], index: 5, kind: output, shape index: {}]
  %s6 = sld [smem:[#allocation0]]
  $region101: #{tpu_custom_call.1} parent=0
    _
  %s8 = ssub.s32 1, %s6
  %s9 = scalar_select 0, %s8, %s6
  %10 = sst [smem:[#allocation2]] %s4
  $region1: #{tpu_custom_call.1} parent=0
    #allocation3 [shape = 'u8[32768]{0}', space=vmem, size = 0x8000, scoped, tag = 'output window, operand 0']
    loop: start=0, step=1, limit=4
    $region2: #{tpu_custom_call.1} parent=1 // loop_pre_header
      _
    $region3: #{tpu_custom_call.1} parent=1 // loop_header
      %s12 = sphi 0, %s16
      %p13 = scmp.ge.s32.totalorder %s12, 4
      %s22 = sphi 0, %s24
      %s25 = sphi 0, %s22
      %s26 = sphi 0, %s25
      %s42 = sphi 0, %s26
      %s46 = sphi 0, %s46
      %s48 = sphi 0, %s46
      %s49 = sphi 0, %s48
      %s63 = sphi 0, %s49
      %s67 = sphi 0, %s67
      %s69 = sphi 0, %s67
      %s70 = sphi 0, %s69
      %s84 = sphi 0, %s70
      %s88 = sphi 0, %s88
      %s90 = sphi 0, %s88
      %s91 = sphi 0, %s90
      %s105 = sphi 0, %s91
      %s109 = sphi 0, %s109
      %s111 = sphi 0, %s109
      %s112 = sphi 0, %s111
      %s126 = sphi 0, %s112
      %s132 = sphi 0, %s134
      %s135 = sphi 0, %s132
      %s136 = sphi 0, %s135
      %s152 = sphi 0, %s136
    $region4: #{tpu_custom_call.1} parent=1 // loop_header_branch
      %15 = sbr.rel (%p13) target = $region8
    $region5: #{tpu_custom_call.1} parent=1 // loop_body
      %s17 = ssub.s32 %s12, 1
      %s18 = ssub.s32 %s12, 2
      %s19 = sadd.s32 %s12, 1
      %s20 = ssub.s32 %s12, %s19
      %p21 = scmp.eq.s32.totalorder %s20, 0
      %s23 = sadd.s32 %s22, 1
      %s24 = scalar_select %p21, %s22, %s23
      %p27 = pneg %p21
      %p28 = scmp.eq.s32.totalorder %s12, 1
      %p29 = por %p27, %p28
      %p30 = scmp.ne.s32.totalorder %s22, %s25
      %p31 = scmp.eq.s32.totalorder %s12, 0
      %p32 = por %p30, %p31
      %p33 = scmp.ne.s32.totalorder %s22, %s25
      %p34 = scmp.eq.s32.totalorder %s17, 1
      %p35 = por %p33, %p34
      %p36 = scmp.ne.s32.totalorder %s25, %s26
      %p37 = scmp.eq.s32.totalorder %s17, 0
      %p38 = por %p36, %p37
      %p39 = scmp.ne.s32.totalorder %s25, %s26
      %p40 = scmp.eq.s32.totalorder %s18, 1
      %p41 = por %p39, %p40
      %p43 = scmp.ne.s32.totalorder %s26, %s42
      %p44 = scmp.eq.s32.totalorder %s18, 0
      %p45 = por %p43, %p44
      %s47 = sadd.s32 %s46, 1
      %p50 = scmp.eq.s32.totalorder %s12, 1
      %p51 = scmp.ne.s32.totalorder %s46, %s48
      %p52 = scmp.eq.s32.totalorder %s12, 0
      %p53 = por %p51, %p52
      %p54 = scmp.ne.s32.totalorder %s46, %s48
      %p55 = scmp.eq.s32.totalorder %s17, 1
      %p56 = por %p54, %p55
      %p57 = scmp.ne.s32.totalorder %s48, %s49
      %p58 = scmp.eq.s32.totalorder %s17, 0
      %p59 = por %p57, %p58
      %p60 = scmp.ne.s32.totalorder %s48, %s49
      %p61 = scmp.eq.s32.totalorder %s18, 1
      %p62 = por %p60, %p61
      %p64 = scmp.ne.s32.totalorder %s49, %s63
      %p65 = scmp.eq.s32.totalorder %s18, 0
      %p66 = por %p64, %p65
      %s68 = sadd.s32 %s67, 1
      %p71 = scmp.eq.s32.totalorder %s12, 1
      %p72 = scmp.ne.s32.totalorder %s67, %s69
      %p73 = scmp.eq.s32.totalorder %s12, 0
      %p74 = por %p72, %p73
      %p75 = scmp.ne.s32.totalorder %s67, %s69
      %p76 = scmp.eq.s32.totalorder %s17, 1
      %p77 = por %p75, %p76
      %p78 = scmp.ne.s32.totalorder %s69, %s70
      %p79 = scmp.eq.s32.totalorder %s17, 0
      %p80 = por %p78, %p79
      %p81 = scmp.ne.s32.totalorder %s69, %s70
      %p82 = scmp.eq.s32.totalorder %s18, 1
      %p83 = por %p81, %p82
      %p85 = scmp.ne.s32.totalorder %s70, %s84
      %p86 = scmp.eq.s32.totalorder %s18, 0
      %p87 = por %p85, %p86
      %s89 = sadd.s32 %s88, 1
      %p92 = scmp.eq.s32.totalorder %s12, 1
      %p93 = scmp.ne.s32.totalorder %s88, %s90
      %p94 = scmp.eq.s32.totalorder %s12, 0
      %p95 = por %p93, %p94
      %p96 = scmp.ne.s32.totalorder %s88, %s90
      %p97 = scmp.eq.s32.totalorder %s17, 1
      %p98 = por %p96, %p97
      %p99 = scmp.ne.s32.totalorder %s90, %s91
      %p100 = scmp.eq.s32.totalorder %s17, 0
      %p101 = por %p99, %p100
      %p102 = scmp.ne.s32.totalorder %s90, %s91
      %p103 = scmp.eq.s32.totalorder %s18, 1
      %p104 = por %p102, %p103
      %p106 = scmp.ne.s32.totalorder %s91, %s105
      %p107 = scmp.eq.s32.totalorder %s18, 0
      %p108 = por %p106, %p107
      %s110 = sadd.s32 %s109, 1
      %p113 = scmp.eq.s32.totalorder %s12, 1
      %p114 = scmp.ne.s32.totalorder %s109, %s111
      %p115 = scmp.eq.s32.totalorder %s12, 0
      %p116 = por %p114, %p115
      %p117 = scmp.ne.s32.totalorder %s109, %s111
      %p118 = scmp.eq.s32.totalorder %s17, 1
      %p119 = por %p117, %p118
      %p120 = scmp.ne.s32.totalorder %s111, %s112
      %p121 = scmp.eq.s32.totalorder %s17, 0
      %p122 = por %p120, %p121
      %p123 = scmp.ne.s32.totalorder %s111, %s112
      %p124 = scmp.eq.s32.totalorder %s18, 1
      %p125 = por %p123, %p124
      %p127 = scmp.ne.s32.totalorder %s112, %s126
      %p128 = scmp.eq.s32.totalorder %s18, 0
      %p129 = por %p127, %p128
      %s130 = ssub.s32 %s12, %s19
      %p131 = scmp.eq.s32.totalorder %s130, 0
      %s133 = sadd.s32 %s132, 1
      %s134 = scalar_select %p131, %s132, %s133
      %p137 = pneg %p131
      %p138 = scmp.eq.s32.totalorder %s12, 1
      %p139 = por %p137, %p138
      %p140 = scmp.ne.s32.totalorder %s132, %s135
      %p141 = scmp.eq.s32.totalorder %s12, 0
      %p142 = por %p140, %p141
      %p143 = scmp.ne.s32.totalorder %s132, %s135
      %p144 = scmp.eq.s32.totalorder %s17, 1
      %p145 = por %p143, %p144
      %p146 = scmp.ne.s32.totalorder %s135, %s136
      %p147 = scmp.eq.s32.totalorder %s17, 0
      %p148 = por %p146, %p147
      %p149 = scmp.ne.s32.totalorder %s135, %s136
      %p150 = scmp.eq.s32.totalorder %s18, 1
      %p151 = por %p149, %p150
      %p153 = scmp.ne.s32.totalorder %s136, %s152
      %p154 = scmp.eq.s32.totalorder %s18, 0
      %p155 = por %p153, %p154
      %p156 = scmp.le.s32.totalorder 1, %s12
      %p157 = scmp.lt.s32.totalorder %s12, 3
      %p158 = pnand %p156, %p157
      %p159 = pneg %p158
      // Predicated region
      $region9: #{tpu_custom_call.1} parent=5 // pred_check
        _
      $region10: #{tpu_custom_call.1} parent=5 // pred_check_branch
        %161 = sbr.rel (%p158) target = $region12
      $region11: #{tpu_custom_call.1} parent=5 // pred_region
        %s162 = ssub.s32 %s12, 1
        // Predicated region
        $region13: #{tpu_custom_call.1} parent=11 // pred_check
          %p163 = pneg %p59
        $region14: #{tpu_custom_call.1} parent=11 // pred_check_branch
          %165 = sbr.rel (%p163) target = $region16
        $region15: #{tpu_custom_call.1} parent=11 // pred_region
          _
        $region16: #{tpu_custom_call.1} parent=11 // pred_fallthru
          _
        // Predicated region
        $region17: #{tpu_custom_call.1} parent=11 // pred_check
          %p166 = pneg %p80
        $region18: #{tpu_custom_call.1} parent=11 // pred_check_branch
          %168 = sbr.rel (%p166) target = $region20
        $region19: #{tpu_custom_call.1} parent=11 // pred_region
          _
        $region20: #{tpu_custom_call.1} parent=11 // pred_fallthru
          _
        // Predicated region
        $region21: #{tpu_custom_call.1} parent=11 // pred_check
          %p169 = pneg %p101
        $region22: #{tpu_custom_call.1} parent=11 // pred_check_branch
          %171 = sbr.rel (%p169) target = $region24
        $region23: #{tpu_custom_call.1} parent=11 // pred_region
          _
        $region24: #{tpu_custom_call.1} parent=11 // pred_fallthru
          _
        // Predicated region
        $region25: #{tpu_custom_call.1} parent=11 // pred_check
          %p172 = pneg %p122
        $region26: #{tpu_custom_call.1} parent=11 // pred_check_branch
          %174 = sbr.rel (%p172) target = $region28
        $region27: #{tpu_custom_call.1} parent=11 // pred_region
          _
        $region28: #{tpu_custom_call.1} parent=11 // pred_fallthru
          _
      $region12: #{tpu_custom_call.1} parent=5 // pred_fallthru
        _
      %p175 = scmp.lt.s32.totalorder %s12, 2
      // Predicated region
      $region29: #{tpu_custom_call.1} parent=5 // pred_check
        %p176 = pneg %p175
      $region30: #{tpu_custom_call.1} parent=5 // pred_check_branch
        %178 = sbr.rel (%p176) target = $region32
      $region31: #{tpu_custom_call.1} parent=5 // pred_region
        // Predicated region
        $region33: #{tpu_custom_call.1} parent=31 // pred_check
          %p179 = pneg %p32
        $region34: #{tpu_custom_call.1} parent=31 // pred_check_branch
          %181 = sbr.rel (%p179) target = $region36
        $region35: #{tpu_custom_call.1} parent=31 // pred_region
          %s182 = smul.u32 4, %s12
          %s183 = ssub.s32 6, %s182
          %p184 = scmp.lt.s32.totalorder %s183, 4
          %s185 = scalar_select %p184, %s183, 4
          %s186 = smul.u32 128, %s185
          %p187 = scmp.lt.s32.totalorder %s182, 5
          %s188 = scalar_select %p187, %s182, 5
          %s189 = smul.addr %s188, 8
          %s190 = scalar_lea.vmem %s0, %s189
          %s191 = smul.u32 4, %s12
          %s192 = ssub.s32 6, %s191
          %p193 = scmp.lt.s32.totalorder %s192, 4
          %s194 = scalar_select %p193, %s192, 4
          %s195 = smul.u32 128, %s194
        $region36: #{tpu_custom_call.1} parent=31 // pred_fallthru
          _
      $region32: #{tpu_custom_call.1} parent=5 // pred_fallthru
        _
      %p196 = scmp.le.s32.totalorder 1, %s12
      %p197 = scmp.lt.s32.totalorder %s12, 3
      %p198 = pnand %p196, %p197
      %p199 = pneg %p198
      // Predicated region
      $region37: #{tpu_custom_call.1} parent=5 // pred_check
        _
      $region38: #{tpu_custom_call.1} parent=5 // pred_check_branch
        %201 = sbr.rel (%p198) target = $region40
      $region39: #{tpu_custom_call.1} parent=5 // pred_region
        %s202 = ssub.s32 %s12, 1
        %s203 = smul.u32 4, %s17
        %s204 = ssub.s32 6, %s203
        %p205 = scmp.lt.s32.totalorder %s204, 4
        %s206 = scalar_select %p205, %s204, 4
        %s207 = smul.u32 128, %s206
        %p208 = scmp.lt.s32.totalorder %s203, 5
        %s209 = scalar_select %p208, %s203, 5
        %s210 = smul.addr %s209, 8
        %s211 = scalar_lea.vmem %s0, %s210
        %p212 = pneg %p38
        %p213 = pneg %p35
        %p214 = pneg %p59
        %p215 = pneg %p56
        %p216 = pneg %p80
        %p217 = pneg %p77
        %p218 = pneg %p101
        %p219 = pneg %p98
        %p220 = pneg %p122
        %p221 = pneg %p119
        %p222 = pneg %p148
        %p223 = pneg %p145
        %s224 = sand.u32 %s135, 1
        %s225 = sand.u32 %s135, 1
        %s226 = smul.addr %s225, 32
        %s227 = scalar_lea.vmem [#allocation3], %s226
        %s228 = smul.u32 4, %s17
        %s229 = ssub.s32 6, %s228
        %p230 = scmp.lt.s32.totalorder %s229, 4
        %s231 = scalar_select %p230, %s229, 4
        %s232 = smul.u32 128, %s231
        %p233 = scmp.lt.s32.totalorder %s228, 5
        %s234 = scalar_select %p233, %s228, 5
        %s235 = smul.addr %s234, 8
        %s236 = scalar_lea.vmem %s0, %s235
        %s237 = smul.u32 4, %s17
        %s238 = ssub.s32 6, %s237
        %p239 = scmp.lt.s32.totalorder %s238, 4
        %s240 = scalar_select %p239, %s238, 4
        %s241 = smul.u32 128, %s240
        %s242 = smul.u32 4, %s17
        %s243 = ssub.s32 6, %s242
        %p244 = scmp.lt.s32.totalorder %s243, 4
        %s245 = scalar_select %p244, %s243, 4
        %s246 = smul.u32 128, %s245
        %v247 = vld [vmem:[%s1] sm:$0xff]
        %v248 = vld [vmem:[%s1 + $0x8] sm:$0xff]
        %v249 = vld [vmem:[%s1 + $0x10] sm:$0xff]
        %v250 = vld [vmem:[%s1 + $0x18] sm:$0xff]
        %v251 = vld [vmem:[%s2] sm:$0x1]
        %v252 = vld [vmem:[%s3] sm:$0x1]
        %s253 = sld [smem:[#allocation2]]
        %v254 = vld [vmem:[%s236] sm:$0xff]
        %v256 = vlaneseq
        %v257 = vshrl.u32 %v256, 7
        %v258 = vsub.s32 0, %v257
        %v259 = vrot.slane %v251, %v258
        %vm261 = vcmask 261120
        %v263 = vsel %vm261, %v254, 0
        %265 = vmatprep.subr.mxu0 0.0
        %266 = vmatpush1.msra.mxu0 %v247
        %267 = vmatprep.subr.mxu0 0.0
        %268 = vmatpush1.msra.mxu0 %v248
        %269 = vmatprep.subr.mxu0 0.0
        %270 = vmatpush1.msra.mxu0 %v249
        %271 = vmatprep.subr.mxu0 0.0
        %272 = vmatpush1.msra.mxu0 %v250
        %273 = vmatprep.subr.mxu0 0.0
        %274 = vmatpush1.msra.mxu0 0.0
        %275 = vmatprep.subr.mxu0 0.0
        %276 = vmatpush1.msra.mxu0 0.0
        %277 = vmatprep.subr.mxu0 0.0
        %278 = vmatpush1.msra.mxu0 0.0
        %279 = vmatprep.subr.mxu0 0.0
        %280 = vmatpush1.msra.mxu0 0.0
        %281 = vmatprep.subr.mxu0 0.0
        %282 = vmatpush1.msra.mxu0 0.0
        %283 = vmatprep.subr.mxu0 0.0
        %284 = vmatpush1.msra.mxu0 0.0
        %285 = vmatprep.subr.mxu0 0.0
        %286 = vmatpush1.msra.mxu0 0.0
        %287 = vmatprep.subr.mxu0 0.0
        %288 = vmatpush1.msra.mxu0 0.0
        %289 = vmatprep.subr.mxu0 0.0
        %290 = vmatpush1.msra.mxu0 0.0
        %291 = vmatprep.subr.mxu0 0.0
        %292 = vmatpush1.msra.mxu0 0.0
        %293 = vmatprep.subr.mxu0 0.0
        %294 = vmatpush1.msra.mxu0 0.0
        %295 = vmatprep.subr.mxu0 0.0
        %296 = vmatpush1.msra.mxu0 0.0
        %297 = vmatprep.subr.mxu0 0.0
        %298 = vmatpush1.msra.mxu0 0.0
        %299 = vmatprep.subr.mxu0 0.0
        %300 = vmatpush1.msra.mxu0 0.0
        %301 = vmatprep.subr.mxu0 0.0
        %302 = vmatpush1.msra.mxu0 0.0
        %303 = vmatprep.subr.mxu0 0.0
        %304 = vmatpush1.msra.mxu0 0.0
        %305 = vmatprep.subr.mxu0 0.0
        %306 = vmatpush1.msra.mxu0 0.0
        %307 = vmatprep.subr.mxu0 0.0
        %308 = vmatpush1.msra.mxu0 0.0
        %309 = vmatprep.subr.mxu0 0.0
        %310 = vmatpush1.msra.mxu0 0.0
        %311 = vmatprep.subr.mxu0 0.0
        %312 = vmatpush1.msra.mxu0 0.0
        %313 = vmatprep.subr.mxu0 0.0
        %314 = vmatpush1.msra.mxu0 0.0
        %315 = vmatprep.subr.mxu0 0.0
        %316 = vmatpush1.msra.mxu0 0.0
        %317 = vmatprep.subr.mxu0 0.0
        %318 = vmatpush1.msra.mxu0 0.0
        %319 = vmatprep.subr.mxu0 0.0
        %320 = vmatpush1.msra.mxu0 0.0
        %321 = vmatprep.subr.mxu0 0.0
        %322 = vmatpush1.msra.mxu0 0.0
        %323 = vmatprep.subr.mxu0 0.0
        %324 = vmatpush1.msra.mxu0 0.0
        %325 = vmatprep.subr.mxu0 0.0
        %326 = vmatpush1.msra.mxu0 0.0
        %327 = vmatprep.subr.mxu0 0.0
        %328 = vmatpush1.msra.mxu0 0.0
        %329 = vmatprep.mubr.f32.mxu0 0.0
        %330 = vmatmul.mubr.f32.gmra.mrb[0].mxu0 %v263
        %v331 = vpop.f32.mrb[0].mxu0
        %v332 = vadd.f32 %v259, %v331
        %v333 = vpop.f32.mrb[0].mxu0
        %334 = vdwg.mxu0
        %v335 = vmax.f32 %v332, 0.0
        %v337 = vlaneseq
        %v338 = vshrl.u32 %v337, 7
        %v339 = vsub.s32 0, %v338
        %v340 = vrot.slane %v252, %v339
        %v342 = vmul.f32 %v335, %v340
        %v343 = vsel %vm261, %v342, 0.0
        %344 = vadd.xlane.f32.xlu0 %v343
        %v345 = vpop.xlane.xlu0 %344
        %v346 = vstv %s253
        %v347 = vadd.f32 %v345, %v346
        %vm348 = vcmask 7168
        %349 = vst.msk [vmem:[%s227] sm:$0xff] %vm348, %v347
        %s350 = scalar_lea.vmem %s236, 8
        %v351 = vld [vmem:[%s350] sm:$0xff]
        %v353 = vsel %vm261, %v351, 0
        %355 = vmatprep.subr.mxu0 0.0
        %356 = vmatpush1.msra.mxu0 %v247
        %357 = vmatprep.subr.mxu0 0.0
        %358 = vmatpush1.msra.mxu0 %v248
        %359 = vmatprep.subr.mxu0 0.0
        %360 = vmatpush1.msra.mxu0 %v249
        %361 = vmatprep.subr.mxu0 0.0
        %362 = vmatpush1.msra.mxu0 %v250
        %363 = vmatprep.subr.mxu0 0.0
        %364 = vmatpush1.msra.mxu0 0.0
        %365 = vmatprep.subr.mxu0 0.0
        %366 = vmatpush1.msra.mxu0 0.0
        %367 = vmatprep.subr.mxu0 0.0
        %368 = vmatpush1.msra.mxu0 0.0
        %369 = vmatprep.subr.mxu0 0.0
        %370 = vmatpush1.msra.mxu0 0.0
        %371 = vmatprep.subr.mxu0 0.0
        %372 = vmatpush1.msra.mxu0 0.0
        %373 = vmatprep.subr.mxu0 0.0
        %374 = vmatpush1.msra.mxu0 0.0
        %375 = vmatprep.subr.mxu0 0.0
        %376 = vmatpush1.msra.mxu0 0.0
        %377 = vmatprep.subr.mxu0 0.0
        %378 = vmatpush1.msra.mxu0 0.0
        %379 = vmatprep.subr.mxu0 0.0
        %380 = vmatpush1.msra.mxu0 0.0
        %381 = vmatprep.subr.mxu0 0.0
        %382 = vmatpush1.msra.mxu0 0.0
        %383 = vmatprep.subr.mxu0 0.0
        %384 = vmatpush1.msra.mxu0 0.0
        %385 = vmatprep.subr.mxu0 0.0
        %386 = vmatpush1.msra.mxu0 0.0
        %387 = vmatprep.subr.mxu0 0.0
        %388 = vmatpush1.msra.mxu0 0.0
        %389 = vmatprep.subr.mxu0 0.0
        %390 = vmatpush1.msra.mxu0 0.0
        %391 = vmatprep.subr.mxu0 0.0
        %392 = vmatpush1.msra.mxu0 0.0
        %393 = vmatprep.subr.mxu0 0.0
        %394 = vmatpush1.msra.mxu0 0.0
        %395 = vmatprep.subr.mxu0 0.0
        %396 = vmatpush1.msra.mxu0 0.0
        %397 = vmatprep.subr.mxu0 0.0
        %398 = vmatpush1.msra.mxu0 0.0
        %399 = vmatprep.subr.mxu0 0.0
        %400 = vmatpush1.msra.mxu0 0.0
        %401 = vmatprep.subr.mxu0 0.0
        %402 = vmatpush1.msra.mxu0 0.0
        %403 = vmatprep.subr.mxu0 0.0
        %404 = vmatpush1.msra.mxu0 0.0
        %405 = vmatprep.subr.mxu0 0.0
        %406 = vmatpush1.msra.mxu0 0.0
        %407 = vmatprep.subr.mxu0 0.0
        %408 = vmatpush1.msra.mxu0 0.0
        %409 = vmatprep.subr.mxu0 0.0
        %410 = vmatpush1.msra.mxu0 0.0
        %411 = vmatprep.subr.mxu0 0.0
        %412 = vmatpush1.msra.mxu0 0.0
        %413 = vmatprep.subr.mxu0 0.0
        %414 = vmatpush1.msra.mxu0 0.0
        %415 = vmatprep.subr.mxu0 0.0
        %416 = vmatpush1.msra.mxu0 0.0
        %417 = vmatprep.subr.mxu0 0.0
        %418 = vmatpush1.msra.mxu0 0.0
        %419 = vmatprep.mubr.f32.mxu0 0.0
        %420 = vmatmul.mubr.f32.gmra.mrb[0].mxu0 %v353
        %v421 = vpop.f32.mrb[0].mxu0
        %v422 = vadd.f32 %v259, %v421
        %v423 = vpop.f32.mrb[0].mxu0
        %424 = vdwg.mxu0
        %v425 = vmax.f32 %v422, 0.0
        %v426 = vmul.f32 %v425, %v340
        %v427 = vsel %vm261, %v426, 0.0
        %428 = vadd.xlane.f32.xlu0 %v427
        %v429 = vpop.xlane.xlu0 %428
        %v430 = vadd.f32 %v429, %v346
        %s431 = scalar_lea.vmem %s227, 8 [#allocation3]
        %432 = vst.msk [vmem:[%s431] sm:$0xff] %vm348, %v430
        %s433 = scalar_lea.vmem %s236, 16
        %v434 = vld [vmem:[%s433] sm:$0xff]
        %v436 = vsel %vm261, %v434, 0
        %438 = vmatprep.subr.mxu0 0.0
        %439 = vmatpush1.msra.mxu0 %v247
        %440 = vmatprep.subr.mxu0 0.0
        %441 = vmatpush1.msra.mxu0 %v248
        %442 = vmatprep.subr.mxu0 0.0
        %443 = vmatpush1.msra.mxu0 %v249
        %444 = vmatprep.subr.mxu0 0.0
        %445 = vmatpush1.msra.mxu0 %v250
        %446 = vmatprep.subr.mxu0 0.0
        %447 = vmatpush1.msra.mxu0 0.0
        %448 = vmatprep.subr.mxu0 0.0
        %449 = vmatpush1.msra.mxu0 0.0
        %450 = vmatprep.subr.mxu0 0.0
        %451 = vmatpush1.msra.mxu0 0.0
        %452 = vmatprep.subr.mxu0 0.0
        %453 = vmatpush1.msra.mxu0 0.0
        %454 = vmatprep.subr.mxu0 0.0
        %455 = vmatpush1.msra.mxu0 0.0
        %456 = vmatprep.subr.mxu0 0.0
        %457 = vmatpush1.msra.mxu0 0.0
        %458 = vmatprep.subr.mxu0 0.0
        %459 = vmatpush1.msra.mxu0 0.0
        %460 = vmatprep.subr.mxu0 0.0
        %461 = vmatpush1.msra.mxu0 0.0
        %462 = vmatprep.subr.mxu0 0.0
        %463 = vmatpush1.msra.mxu0 0.0
        %464 = vmatprep.subr.mxu0 0.0
        %465 = vmatpush1.msra.mxu0 0.0
        %466 = vmatprep.subr.mxu0 0.0
        %467 = vmatpush1.msra.mxu0 0.0
        %468 = vmatprep.subr.mxu0 0.0
        %469 = vmatpush1.msra.mxu0 0.0
        %470 = vmatprep.subr.mxu0 0.0
        %471 = vmatpush1.msra.mxu0 0.0
        %472 = vmatprep.subr.mxu0 0.0
        %473 = vmatpush1.msra.mxu0 0.0
        %474 = vmatprep.subr.mxu0 0.0
        %475 = vmatpush1.msra.mxu0 0.0
        %476 = vmatprep.subr.mxu0 0.0
        %477 = vmatpush1.msra.mxu0 0.0
        %478 = vmatprep.subr.mxu0 0.0
        %479 = vmatpush1.msra.mxu0 0.0
        %480 = vmatprep.subr.mxu0 0.0
        %481 = vmatpush1.msra.mxu0 0.0
        %482 = vmatprep.subr.mxu0 0.0
        %483 = vmatpush1.msra.mxu0 0.0
        %484 = vmatprep.subr.mxu0 0.0
        %485 = vmatpush1.msra.mxu0 0.0
        %486 = vmatprep.subr.mxu0 0.0
        %487 = vmatpush1.msra.mxu0 0.0
        %488 = vmatprep.subr.mxu0 0.0
        %489 = vmatpush1.msra.mxu0 0.0
        %490 = vmatprep.subr.mxu0 0.0
        %491 = vmatpush1.msra.mxu0 0.0
        %492 = vmatprep.subr.mxu0 0.0
        %493 = vmatpush1.msra.mxu0 0.0
        %494 = vmatprep.subr.mxu0 0.0
        %495 = vmatpush1.msra.mxu0 0.0
        %496 = vmatprep.subr.mxu0 0.0
        %497 = vmatpush1.msra.mxu0 0.0
        %498 = vmatprep.subr.mxu0 0.0
        %499 = vmatpush1.msra.mxu0 0.0
        %500 = vmatprep.subr.mxu0 0.0
        %501 = vmatpush1.msra.mxu0 0.0
        %502 = vmatprep.mubr.f32.mxu0 0.0
        %503 = vmatmul.mubr.f32.gmra.mrb[0].mxu0 %v436
        %v504 = vpop.f32.mrb[0].mxu0
        %v505 = vadd.f32 %v259, %v504
        %v506 = vpop.f32.mrb[0].mxu0
        %507 = vdwg.mxu0
        %v508 = vmax.f32 %v505, 0.0
        %v509 = vmul.f32 %v508, %v340
        %v510 = vsel %vm261, %v509, 0.0
        %511 = vadd.xlane.f32.xlu0 %v510
        %v512 = vpop.xlane.xlu0 %511
        %v513 = vadd.f32 %v512, %v346
        %s514 = scalar_lea.vmem %s227, 16 [#allocation3]
        %515 = vst.msk [vmem:[%s514] sm:$0xff] %vm348, %v513
        %s516 = scalar_lea.vmem %s236, 24
        %v517 = vld [vmem:[%s516] sm:$0xff]
        %v519 = vsel %vm261, %v517, 0
        %521 = vmatprep.subr.mxu0 0.0
        %522 = vmatpush1.msra.mxu0 %v247
        %523 = vmatprep.subr.mxu0 0.0
        %524 = vmatpush1.msra.mxu0 %v248
        %525 = vmatprep.subr.mxu0 0.0
        %526 = vmatpush1.msra.mxu0 %v249
        %527 = vmatprep.subr.mxu0 0.0
        %528 = vmatpush1.msra.mxu0 %v250
        %529 = vmatprep.subr.mxu0 0.0
        %530 = vmatpush1.msra.mxu0 0.0
        %531 = vmatprep.subr.mxu0 0.0
        %532 = vmatpush1.msra.mxu0 0.0
        %533 = vmatprep.subr.mxu0 0.0
        %534 = vmatpush1.msra.mxu0 0.0
        %535 = vmatprep.subr.mxu0 0.0
        %536 = vmatpush1.msra.mxu0 0.0
        %537 = vmatprep.subr.mxu0 0.0
        %538 = vmatpush1.msra.mxu0 0.0
        %539 = vmatprep.subr.mxu0 0.0
        %540 = vmatpush1.msra.mxu0 0.0
        %541 = vmatprep.subr.mxu0 0.0
        %542 = vmatpush1.msra.mxu0 0.0
        %543 = vmatprep.subr.mxu0 0.0
        %544 = vmatpush1.msra.mxu0 0.0
        %545 = vmatprep.subr.mxu0 0.0
        %546 = vmatpush1.msra.mxu0 0.0
        %547 = vmatprep.subr.mxu0 0.0
        %548 = vmatpush1.msra.mxu0 0.0
        %549 = vmatprep.subr.mxu0 0.0
        %550 = vmatpush1.msra.mxu0 0.0
        %551 = vmatprep.subr.mxu0 0.0
        %552 = vmatpush1.msra.mxu0 0.0
        %553 = vmatprep.subr.mxu0 0.0
        %554 = vmatpush1.msra.mxu0 0.0
        %555 = vmatprep.subr.mxu0 0.0
        %556 = vmatpush1.msra.mxu0 0.0
        %557 = vmatprep.subr.mxu0 0.0
        %558 = vmatpush1.msra.mxu0 0.0
        %559 = vmatprep.subr.mxu0 0.0
        %560 = vmatpush1.msra.mxu0 0.0
        %561 = vmatprep.subr.mxu0 0.0
        %562 = vmatpush1.msra.mxu0 0.0
        %563 = vmatprep.subr.mxu0 0.0
        %564 = vmatpush1.msra.mxu0 0.0
        %565 = vmatprep.subr.mxu0 0.0
        %566 = vmatpush1.msra.mxu0 0.0
        %567 = vmatprep.subr.mxu0 0.0
        %568 = vmatpush1.msra.mxu0 0.0
        %569 = vmatprep.subr.mxu0 0.0
        %570 = vmatpush1.msra.mxu0 0.0
        %571 = vmatprep.subr.mxu0 0.0
        %572 = vmatpush1.msra.mxu0 0.0
        %573 = vmatprep.subr.mxu0 0.0
        %574 = vmatpush1.msra.mxu0 0.0
        %575 = vmatprep.subr.mxu0 0.0
        %576 = vmatpush1.msra.mxu0 0.0
        %577 = vmatprep.subr.mxu0 0.0
        %578 = vmatpush1.msra.mxu0 0.0
        %579 = vmatprep.subr.mxu0 0.0
        %580 = vmatpush1.msra.mxu0 0.0
        %581 = vmatprep.subr.mxu0 0.0
        %582 = vmatpush1.msra.mxu0 0.0
        %583 = vmatprep.subr.mxu0 0.0
        %584 = vmatpush1.msra.mxu0 0.0
        %585 = vmatprep.mubr.f32.mxu0 0.0
        %586 = vmatmul.mubr.f32.gmra.mrb[0].mxu0 %v519
        %v587 = vpop.f32.mrb[0].mxu0
        %v588 = vadd.f32 %v259, %v587
        %v589 = vpop.f32.mrb[0].mxu0
        %590 = vdwg.mxu0
        %v591 = vmax.f32 %v588, 0.0
        %v592 = vmul.f32 %v591, %v340
        %v593 = vsel %vm261, %v592, 0.0
        %594 = vadd.xlane.f32.xlu0 %v593
        %v595 = vpop.xlane.xlu0 %594
        %v596 = vadd.f32 %v595, %v346
        %s597 = scalar_lea.vmem %s227, 24 [#allocation3]
        %598 = vst.msk [vmem:[%s597] sm:$0xff] %vm348, %v596
        %s599 = sand.u32 %s135, 1
        %s600 = sand.u32 %s135, 1
        %s601 = smul.addr %s600, 32
        %s602 = scalar_lea.vmem [#allocation3], %s601
        // Predicated region
        $region41: #{tpu_custom_call.1} parent=39 // pred_check
          %p603 = pneg %p145
        $region42: #{tpu_custom_call.1} parent=39 // pred_check_branch
          %605 = sbr.rel (%p603) target = $region44
        $region43: #{tpu_custom_call.1} parent=39 // pred_region
          %s606 = smul.u32 4, %s17
          %s607 = ssub.s32 6, %s606
          %p608 = scmp.lt.s32.totalorder %s607, 4
          %s609 = scalar_select %p608, %s607, 4
          %s610 = smul.u32 128, %s609
          %p611 = scmp.ne.s32.totalorder 0, %s610
          %s612 = smul.addr %s606, 8
          %s613 = scalar_lea.vmem %s5, %s612
          // Predicated region
          $region45: #{tpu_custom_call.1} parent=43 // pred_check
            %p614 = pneg %p611
          $region46: #{tpu_custom_call.1} parent=43 // pred_check_branch
            %616 = sbr.rel (%p614) target = $region48
          $region47: #{tpu_custom_call.1} parent=43 // pred_region
            // Predicated region
            $region49: #{tpu_custom_call.1} parent=47 // pred_check
              _
            $region50: #{tpu_custom_call.1} parent=47 // pred_check_branch
              %618 = sbr.rel (0) target = $region52
            $region51: #{tpu_custom_call.1} parent=47 // pred_region
              // Predicated region
              $region71: #{tpu_custom_call.1} parent=51 // pred_check
                _
              $region72: #{tpu_custom_call.1} parent=51 // pred_check_branch
                %673 = sbr.rel (0) target = $region74
              $region73: #{tpu_custom_call.1} parent=51 // pred_region
                %s674 = sshrl.u32 %s609, 2
                // While loop
                $region75: #{tpu_custom_call.1} parent=73 // loop_pre_header
                  _
                $region76: #{tpu_custom_call.1} parent=73 // loop_header
                  %s676 = sphi 0, %s678
                  %p677 = scmp.ge.s32.totalorder %s676, %s674
                  %s681 = sphi 0, %s694
                  %s682 = sphi %s602, %s697
                  %s683 = sphi %s613, %s698
                $region77: #{tpu_custom_call.1} parent=73 // loop_header_branch
                  %680 = sbr.rel (%p677) target = $region81
                $region78: #{tpu_custom_call.1} parent=73 // loop_body
                  %v684 = vld [vmem:[%s682] sm:$0xff]
                  %685 = vst [vmem:[%s683] sm:$0xff] %v684
                  %v686 = vld [vmem:[%s682 + $0x8] sm:$0xff]
                  %687 = vst [vmem:[%s683 + $0x8] sm:$0xff] %v686
                  %v688 = vld [vmem:[%s682 + $0x10] sm:$0xff]
                  %689 = vst [vmem:[%s683 + $0x10] sm:$0xff] %v688
                  %v690 = vld [vmem:[%s682 + $0x18] sm:$0xff]
                  %691 = vst [vmem:[%s683 + $0x18] sm:$0xff] %v690
                  %s692 = sadd.s32 1, %s681
                  %p693 = scmp.ge.s32.totalorder %s692, %s674
                  %s694 = scalar_select %p693, 0, %s692
                  %s695 = smul.u32 %s694, 32
                  %s696 = smul.u32 %s694, 32
                  %s697 = scalar_lea.vmem %s602, %s695 [#allocation3]
                  %s698 = scalar_lea.vmem %s613, %s696
                $region79: #{tpu_custom_call.1} parent=73 // loop_footer
                  %s678 = sadd.s32 %s676, 1
                $region80: #{tpu_custom_call.1} parent=73 // loop_footer_branch
                  %675 = sbr.rel target = $region76
                $region81: #{tpu_custom_call.1} parent=73 // loop_exit
                  _
                %s699 = sshrl.u32 %s609, 2
                %s700 = sand.u32 %s609, 3
                %s701 = smul.u32 %s699, 4
                %s702 = smul.u32 8, %s701
                %s703 = scalar_lea.vmem %s602, %s702 [#allocation3]
                %s704 = smul.u32 8, %s701
                %s705 = scalar_lea.vmem %s613, %s704
                // While loop
                $region82: #{tpu_custom_call.1} parent=73 // loop_pre_header
                  _
                $region83: #{tpu_custom_call.1} parent=73 // loop_header
                  %s707 = sphi 0, %s709
                  %p708 = scmp.ge.s32.totalorder %s707, %s700
                  %s712 = sphi 0, %s719
                  %s713 = sphi %s703, %s722
                  %s714 = sphi %s705, %s723
                $region84: #{tpu_custom_call.1} parent=73 // loop_header_branch
                  %711 = sbr.rel (%p708) target = $region88
                $region85: #{tpu_custom_call.1} parent=73 // loop_body
                  %v715 = vld [vmem:[%s713] sm:$0xff]
                  %716 = vst [vmem:[%s714] sm:$0xff] %v715
                  %s717 = sadd.s32 1, %s712
                  %p718 = scmp.ge.s32.totalorder %s717, %s700
                  %s719 = scalar_select %p718, 0, %s717
                  %s720 = smul.u32 %s719, 8
                  %s721 = smul.u32 %s719, 8
                  %s722 = scalar_lea.vmem %s703, %s720 [#allocation3]
                  %s723 = scalar_lea.vmem %s705, %s721
                $region86: #{tpu_custom_call.1} parent=73 // loop_footer
                  %s709 = sadd.s32 %s707, 1
                $region87: #{tpu_custom_call.1} parent=73 // loop_footer_branch
                  %706 = sbr.rel target = $region83
                $region88: #{tpu_custom_call.1} parent=73 // loop_exit
                  _
              $region74: #{tpu_custom_call.1} parent=51 // pred_fallthru
                _
              // Predicated region
              $region89: #{tpu_custom_call.1} parent=51 // pred_check
                _
              $region90: #{tpu_custom_call.1} parent=51 // pred_check_branch
                %725 = sbr.rel target = $region92
              $region91: #{tpu_custom_call.1} parent=51 // pred_region
                _
              $region92: #{tpu_custom_call.1} parent=51 // pred_fallthru
                _
            $region52: #{tpu_custom_call.1} parent=47 // pred_fallthru
              _
            // Predicated region
            $region53: #{tpu_custom_call.1} parent=47 // pred_check
              _
            $region54: #{tpu_custom_call.1} parent=47 // pred_check_branch
              %620 = sbr.rel target = $region56
            $region55: #{tpu_custom_call.1} parent=47 // pred_region
              %s622 = sshrl.u32 %s609, 2
              // While loop
              $region57: #{tpu_custom_call.1} parent=55 // loop_pre_header
                _
              $region58: #{tpu_custom_call.1} parent=55 // loop_header
                %s624 = sphi 0, %s626
                %p625 = scmp.ge.s32.totalorder %s624, %s622
                %s629 = sphi 0, %s642
                %s630 = sphi %s602, %s645
                %s631 = sphi %s613, %s646
              $region59: #{tpu_custom_call.1} parent=55 // loop_header_branch
                %628 = sbr.rel (%p625) target = $region63
              $region60: #{tpu_custom_call.1} parent=55 // loop_body
                %v632 = vld [vmem:[%s630] sm:$0xff]
                %633 = vst [vmem:[%s631] sm:$0xff] %v632
                %v634 = vld [vmem:[%s630 + $0x8] sm:$0xff]
                %635 = vst [vmem:[%s631 + $0x8] sm:$0xff] %v634
                %v636 = vld [vmem:[%s630 + $0x10] sm:$0xff]
                %637 = vst [vmem:[%s631 + $0x10] sm:$0xff] %v636
                %v638 = vld [vmem:[%s630 + $0x18] sm:$0xff]
                %639 = vst [vmem:[%s631 + $0x18] sm:$0xff] %v638
                %s640 = sadd.s32 1, %s629
                %p641 = scmp.ge.s32.totalorder %s640, %s622
                %s642 = scalar_select %p641, 0, %s640
                %s643 = smul.u32 %s642, 32
                %s644 = smul.u32 %s642, 32
                %s645 = scalar_lea.vmem %s602, %s643 [#allocation3]
                %s646 = scalar_lea.vmem %s613, %s644
              $region61: #{tpu_custom_call.1} parent=55 // loop_footer
                %s626 = sadd.s32 %s624, 1
              $region62: #{tpu_custom_call.1} parent=55 // loop_footer_branch
                %623 = sbr.rel target = $region58
              $region63: #{tpu_custom_call.1} parent=55 // loop_exit
                _
              %s647 = sshrl.u32 %s609, 2
              %s648 = sand.u32 %s609, 3
              %s649 = smul.u32 %s647, 4
              %s650 = smul.u32 8, %s649
              %s651 = scalar_lea.vmem %s602, %s650 [#allocation3]
              %s652 = smul.u32 8, %s649
              %s653 = scalar_lea.vmem %s613, %s652
              // While loop
              $region64: #{tpu_custom_call.1} parent=55 // loop_pre_header
                _
              $region65: #{tpu_custom_call.1} parent=55 // loop_header
                %s655 = sphi 0, %s657
                %p656 = scmp.ge.s32.totalorder %s655, %s648
                %s660 = sphi 0, %s667
                %s661 = sphi %s651, %s670
                %s662 = sphi %s653, %s671
              $region66: #{tpu_custom_call.1} parent=55 // loop_header_branch
                %659 = sbr.rel (%p656) target = $region70
              $region67: #{tpu_custom_call.1} parent=55 // loop_body
                %v663 = vld [vmem:[%s661] sm:$0xff]
                %664 = vst [vmem:[%s662] sm:$0xff] %v663
                %s665 = sadd.s32 1, %s660
                %p666 = scmp.ge.s32.totalorder %s665, %s648
                %s667 = scalar_select %p666, 0, %s665
                %s668 = smul.u32 %s667, 8
                %s669 = smul.u32 %s667, 8
                %s670 = scalar_lea.vmem %s651, %s668 [#allocation3]
                %s671 = scalar_lea.vmem %s653, %s669
              $region68: #{tpu_custom_call.1} parent=55 // loop_footer
                %s657 = sadd.s32 %s655, 1
              $region69: #{tpu_custom_call.1} parent=55 // loop_footer_branch
                %654 = sbr.rel target = $region65
              $region70: #{tpu_custom_call.1} parent=55 // loop_exit
                _
            $region56: #{tpu_custom_call.1} parent=47 // pred_fallthru
              _
          $region48: #{tpu_custom_call.1} parent=43 // pred_fallthru
            _
          %726 = vnop
        $region44: #{tpu_custom_call.1} parent=39 // pred_fallthru
          _
      $region40: #{tpu_custom_call.1} parent=5 // pred_fallthru
        _
      %p727 = scmp.le.s32.totalorder 2, %s12
      // Predicated region
      $region93: #{tpu_custom_call.1} parent=5 // pred_check
        %p728 = pneg %p727
      $region94: #{tpu_custom_call.1} parent=5 // pred_check_branch
        %730 = sbr.rel (%p728) target = $region96
      $region95: #{tpu_custom_call.1} parent=5 // pred_region
        %s731 = ssub.s32 %s12, 2
        // Predicated region
        $region97: #{tpu_custom_call.1} parent=95 // pred_check
          %p732 = pneg %p151
        $region98: #{tpu_custom_call.1} parent=95 // pred_check_branch
          %734 = sbr.rel (%p732) target = $region100
        $region99: #{tpu_custom_call.1} parent=95 // pred_region
          %s735 = sand.u32 %s136, 1
          %s736 = sand.u32 %s136, 1
          %s737 = smul.addr %s736, 32
          %s738 = scalar_lea.vmem [#allocation3], %s737
        $region100: #{tpu_custom_call.1} parent=95 // pred_fallthru
          _
      $region96: #{tpu_custom_call.1} parent=5 // pred_fallthru
        _
    $region6: #{tpu_custom_call.1} parent=1 // loop_footer
      %s16 = sadd.s32 1, %s12
    $region7: #{tpu_custom_call.1} parent=1 // loop_footer_branch
      %11 = sbr.rel target = $region3
    $region8: #{tpu_custom_call.1} parent=1 // loop_exit
      _

</llo_original>
